<compile_context>
chip_gen: v7x
topology: tpu7x:2x2x1
jax: 0.10.0
libtpu: 0.0.40
codegen_flags: <defaults>
</compile_context>

<pallas_src>
import functools

import jax
import jax.numpy as jnp
from jax import lax
from jax.experimental import pallas as pl
from jax.experimental.pallas import tpu as pltpu

_F32 = jnp.float32
_HIGHEST = lax.Precision.HIGHEST

# Horizons up to this many total steps use the fully-unrolled kernel
# (register-resident warmup drive, static indexing); longer horizons use the
# fori_loop kernel with VMEM-resident drive/weights.
_UNROLL_LIMIT = 128


# -----------------------------------------------------------------------------
# Kernels
# -----------------------------------------------------------------------------
def _esn_unrolled_kernel(u_seq_ref, win_ref, w_ref, wout_ref, b_ref, leak_ref,
                         pred_ref, states_scr, *, total_steps, warm_steps,
                         mxu_dtype):
  """Fully-unrolled warmup + closed-loop rollout (short horizons).

  u_seq_ref  : (warm_steps, dim)   teacher-forced warmup inputs (time-major)
  win_ref    : (dim, N)            input weights
  w_ref      : (N, N)              recurrent weights
  wout_ref   : (N, dim)            readout weights
  b_ref      : (1, N)              reservoir bias
  leak_ref   : (1,)  SMEM          leak rate
  pred_ref   : (total_steps, dim)  output, time-major readouts
  states_scr : (total_steps, N)    scratch: reservoir state after every step
  """
  n = w_ref.shape[0]
  b = b_ref[...]                                    # (1, N) f32
  win = win_ref[...]                                # (dim, N) f32
  # Hoist the scalar->vector broadcasts once (JAX does not CSE broadcasts).
  leak = jnp.full((1, n), leak_ref[0], dtype=_F32)
  one_minus_leak = 1.0 - leak

  # ---- Off-critical-path precompute (register resident) --------------------
  # (1) Batched warmup input drive: one (warm, dim)@(dim, N) matmul, kept in
  #     vregs; the unrolled loop slices rows with static indices.
  prein = jnp.dot(u_seq_ref[...], win, preferred_element_type=_F32) + b
  # (2) Closed-loop feedback fold: u_t = x_t @ W_out, so the per-step drive
  #     collapses to x_t @ (W + W_out @ W_in) = x_t @ W_eff.
  w_f32 = w_ref[...]
  w_eff = w_f32 + jnp.dot(wout_ref[...], win, preferred_element_type=_F32)
  # (3) Serial-chain MXU operands in reduced precision (f32 accumulate).
  w_mxu = w_f32.astype(mxu_dtype)
  w_eff_mxu = w_eff.astype(mxu_dtype)

  # ---- Serial recurrence (state carried in vregs) ---------------------------
  x = jnp.zeros((1, n), _F32)
  for i in range(warm_steps):                       # teacher-forced warmup
    pre = prein[i:i + 1, :] + jnp.dot(
        x.astype(mxu_dtype), w_mxu, preferred_element_type=_F32)
    x = one_minus_leak * x + leak * jnp.tanh(pre)
    states_scr[i:i + 1, :] = x                      # write-only, off the chain
  for i in range(warm_steps, total_steps):          # closed-loop rollout
    pre = jnp.dot(x.astype(mxu_dtype), w_eff_mxu,
                  preferred_element_type=_F32) + b
    x = one_minus_leak * x + leak * jnp.tanh(pre)
    states_scr[i:i + 1, :] = x
  del x  # final state not needed; all readouts come from states_scr

  # ---- Batched readout: one MXU call, one dense store -----------------------
  # TODO(synk): try weight-stationary MXU driving (pltpu.matmul_push_rhs of
  # W / W_eff once per phase) if a bundle dump shows Mosaic re-streaming the
  # loop-invariant RHS on every unrolled step.
  pred_ref[...] = jnp.dot(states_scr[...], wout_ref[...],
                          preferred_element_type=_F32)


def _esn_looped_kernel(u_seq_ref, win_ref, w_ref, wout_ref, b_ref, leak_ref,
                       pred_ref, prein_scr, states_scr, wmxu_scr, weff_scr, *,
                       total_steps, warm_steps, mxu_dtype, unroll):
  """fori_loop fallback for long horizons (weights/drive in VMEM scratch to
  bound vreg pressure across the partially-unrolled loops)."""
  n = w_ref.shape[0]
  b = b_ref[...]
  win = win_ref[...]
  leak = jnp.full((1, n), leak_ref[0], dtype=_F32)
  one_minus_leak = 1.0 - leak

  # Off-critical-path precompute, parked in VMEM scratch.
  prein_scr[...] = jnp.dot(u_seq_ref[...], win, preferred_element_type=_F32) + b
  w_f32 = w_ref[...]
  wmxu_scr[...] = w_f32.astype(mxu_dtype)
  weff_scr[...] = (w_f32 + jnp.dot(wout_ref[...], win,
                                   preferred_element_type=_F32)
                   ).astype(mxu_dtype)

  def warm_step(i, x):
    pre = prein_scr[pl.ds(i, 1), :] + jnp.dot(
        x.astype(mxu_dtype), wmxu_scr[...], preferred_element_type=_F32)
    x = one_minus_leak * x + leak * jnp.tanh(pre)
    states_scr[pl.ds(i, 1), :] = x
    return x

  def free_step(i, x):
    pre = jnp.dot(x.astype(mxu_dtype), weff_scr[...],
                  preferred_element_type=_F32) + b
    x = one_minus_leak * x + leak * jnp.tanh(pre)
    states_scr[pl.ds(i, 1), :] = x
    return x

  x0 = jnp.zeros((1, n), _F32)
  x = lax.fori_loop(0, warm_steps, warm_step, x0, unroll=unroll)
  x = lax.fori_loop(warm_steps, total_steps, free_step, x, unroll=unroll)
  del x

  pred_ref[...] = jnp.dot(states_scr[...], wout_ref[...],
                          preferred_element_type=_F32)


# -----------------------------------------------------------------------------
# Jitted forward wrapper (one executable: slice/transpose/casts + pallas_call)
# -----------------------------------------------------------------------------
@functools.partial(jax.jit,
                   static_argnames=("total_steps", "warm_steps", "mxu_dtype"))
def _forward_impl(y, w_in, w, w_out, b, leak, *, total_steps, warm_steps,
                  mxu_dtype):
  dim = y.shape[0]
  n = w.shape[0]

  u_seq = y[:, :warm_steps].T.astype(_F32)            # (warm, dim)
  w_in32 = w_in.astype(_F32)
  w32 = w.astype(_F32)
  w_out32 = w_out.astype(_F32)
  b32 = jnp.reshape(b, (1, n)).astype(_F32)
  leak_arr = jnp.reshape(leak, (1,)).astype(_F32)

  vmem = pl.BlockSpec(memory_space=pltpu.MemorySpace.VMEM)
  smem = pl.BlockSpec(memory_space=pltpu.MemorySpace.SMEM)
  in_specs = [vmem, vmem, vmem, vmem, vmem, smem]
  out_shape = jax.ShapeDtypeStruct((total_steps, dim), _F32)

  if total_steps <= _UNROLL_LIMIT:
    kernel = functools.partial(_esn_unrolled_kernel, total_steps=total_steps,
                               warm_steps=warm_steps, mxu_dtype=mxu_dtype)
    scratch = [pltpu.VMEM((total_steps, n), _F32)]          # per-step states
  else:
    kernel = functools.partial(_esn_looped_kernel, total_steps=total_steps,
                               warm_steps=warm_steps, mxu_dtype=mxu_dtype,
                               unroll=8)
    scratch = [
        pltpu.VMEM((warm_steps, n), _F32),                  # warmup drive
        pltpu.VMEM((total_steps, n), _F32),                 # per-step states
        pltpu.VMEM((n, n), mxu_dtype),                      # W (MXU dtype)
        pltpu.VMEM((n, n), mxu_dtype),                      # W_eff (MXU dtype)
    ]

  # Whole-array-in-VMEM, no grid: footprint is <1 MiB at these shapes, far
  # under the default scoped VMEM limit on v5e/v6e/v7x.
  pred_tm = pl.pallas_call(
      kernel,
      out_shape=out_shape,
      in_specs=in_specs,
      out_specs=vmem,
      scratch_shapes=scratch,
  )(u_seq, w_in32, w32, w_out32, b32, leak_arr)

  # Back to the PyTorch layout (dim, T); fused into the same executable, so no
  # extra dispatch.
  return pred_tm.T


def reservoir_forward(t, y, params, warm_steps, mxu_dtype=jnp.bfloat16):
  """Pallas equivalent of ReservoirModelWrapper.forward -> (pred, None, None)."""
  w_in, w, w_out, b, leak = params
  total_steps = int(t.shape[0])
  warm_steps = int(warm_steps)
  if not 1 <= warm_steps <= total_steps:
    raise ValueError("need 1 <= warm_steps <= t.shape[0]")
  pred = _forward_impl(
      jnp.asarray(y), jnp.asarray(w_in), jnp.asarray(w), jnp.asarray(w_out),
      jnp.asarray(b), jnp.asarray(leak, _F32),
      total_steps=total_steps, warm_steps=warm_steps, mxu_dtype=mxu_dtype)
  return pred, None, None


# -----------------------------------------------------------------------------
# Pure-JAX references
# -----------------------------------------------------------------------------
@functools.partial(jax.jit, static_argnames=("total_steps", "warm_steps"))
def _reference_impl(y, w_in, w, w_out, b, leak, *, total_steps, warm_steps):
  """Faithful f32 per-step reference (mirrors the PyTorch semantics)."""
  n = w.shape[0]
  u_warm = y[:, :warm_steps].T.astype(_F32)
  w_in = w_in.astype(_F32)
  w = w.astype(_F32)
  w_out = w_out.astype(_F32)
  b = jnp.reshape(b, (1, n)).astype(_F32)
  leak = leak.astype(_F32)

  def reservoir_step(x, u_row):
    pre = (jnp.dot(u_row[None, :], w_in, precision=_HIGHEST)
           + jnp.dot(x, w, precision=_HIGHEST) + b)
    x = (1.0 - leak) * x + leak * jnp.tanh(pre)
    return x, x[0]

  x0 = jnp.zeros((1, n), _F32)
  x, warm_states = lax.scan(reservoir_step, x0, u_warm)

  def free_step(x, _):
    u = jnp.dot(x, w_out, precision=_HIGHEST)[0]
    return reservoir_step(x, u)

  _, free_states = lax.scan(free_step, x, None,
                            length=total_steps - warm_steps)
  states = jnp.concatenate([warm_states, free_states], axis=0)   # (T, N)
  return jnp.dot(states, w_out, precision=_HIGHEST).T            # (dim, T)


@functools.partial(jax.jit,
                   static_argnames=("total_steps", "warm_steps", "mxu_dtype"))
def _matched_impl(y, w_in, w, w_out, b, leak, *, total_steps, warm_steps,
                  mxu_dtype):
  """Reference that mirrors the kernel's algebra/precision (W_eff fold + bf16
  MXU operands); used to check implementation correctness tightly."""
  n = w.shape[0]
  u_seq = y[:, :warm_steps].T.astype(_F32)
  w_in = w_in.astype(_F32)
  w32 = w.astype(_F32)
  w_out = w_out.astype(_F32)
  b = jnp.reshape(b, (1, n)).astype(_F32)
  leak = leak.astype(_F32)

  prein = jnp.dot(u_seq, w_in, precision=_HIGHEST) + b
  w_mxu = w32.astype(mxu_dtype)
  w_eff_mxu = (w32 + jnp.dot(w_out, w_in, precision=_HIGHEST)).astype(mxu_dtype)

  def warm_step(x, pre_row):
    pre = pre_row[None, :] + jnp.dot(x.astype(mxu_dtype), w_mxu,
                                     preferred_element_type=_F32)
    x = (1.0 - leak) * x + leak * jnp.tanh(pre)
    return x, x[0]

  x0 = jnp.zeros((1, n), _F32)
  x, warm_states = lax.scan(warm_step, x0, prein)

  def free_step(x, _):
    pre = jnp.dot(x.astype(mxu_dtype), w_eff_mxu,
                  preferred_element_type=_F32) + b
    x = (1.0 - leak) * x + leak * jnp.tanh(pre)
    return x, x[0]

  _, free_states = lax.scan(free_step, x, None,
                            length=total_steps - warm_steps)
  states = jnp.concatenate([warm_states, free_states], axis=0)
  return jnp.dot(states, w_out, precision=_HIGHEST).T


def reservoir_forward_ref(t, y, params, warm_steps):
  w_in, w, w_out, b, leak = params
  pred = _reference_impl(
      jnp.asarray(y), jnp.asarray(w_in), jnp.asarray(w), jnp.asarray(w_out),
      jnp.asarray(b), jnp.asarray(leak, _F32),
      total_steps=int(t.shape[0]), warm_steps=int(warm_steps))
  return pred, None, None


def reservoir_forward_matched(t, y, params, warm_steps, mxu_dtype):
  w_in, w, w_out, b, leak = params
  pred = _matched_impl(
      jnp.asarray(y), jnp.asarray(w_in), jnp.asarray(w), jnp.asarray(w_out),
      jnp.asarray(b), jnp.asarray(leak, _F32),
      total_steps=int(t.shape[0]), warm_steps=int(warm_steps),
      mxu_dtype=mxu_dtype)
  return pred, None, None


# -----------------------------------------------------------------------------
# Test harness
# -----------------------------------------------------------------------------
def make_params(key, dim, n):
  k1, k2, k3, k4 = jax.random.split(key, 4)
  w_in = jax.random.normal(k1, (dim, n), _F32) * 0.5
  w = jax.random.normal(k2, (n, n), _F32) * (0.9 / jnp.sqrt(n))
  # Small readout scale keeps the closed-loop map non-explosive (a fitted ESN
  # readout is similarly small), so comparisons against the f32 reference are
  # meaningful over the rollout horizon.
  w_out = jax.random.normal(k3, (n, dim), _F32) * 0.02
  b = jax.random.normal(k4, (1, n), _F32) * 0.1
  leak = 0.3
  return w_in, w, w_out, b, leak


if __name__ == "__main__":
  DIM, N = 4, 128
  key = jax.random.PRNGKey(0)
  kp1, ky1, kp2, ky2 = jax.random.split(key, 4)

  # --- Config 1: short horizon -> fully-unrolled kernel, bf16 MXU operands ---
  T1, WARM1 = 16, 8
  params1 = make_params(kp1, DIM, N)
  t1 = jnp.linspace(0.0, 1.0, T1, dtype=_F32)
  y1 = jax.random.normal(ky1, (DIM, T1), _F32)

  pred1, _, _ = reservoir_forward(t1, y1, params1, WARM1)
  pred1 = jax.block_until_ready(pred1)
  assert pred1.shape == (DIM, T1), pred1.shape
  assert pred1.dtype == _F32

  # (a) implementation check vs a reference with the SAME algebra/precision.
  pred1_match, _, _ = reservoir_forward_matched(t1, y1, params1, WARM1,
                                                jnp.bfloat16)
  err_match = float(jnp.max(jnp.abs(pred1 - pred1_match)))
  assert jnp.allclose(pred1, pred1_match, atol=2e-3, rtol=2e-3), err_match

  # (b) precision sanity vs the faithful f32 reference: looser bound because
  #     the serial-chain matmuls intentionally use bf16 operands (f32 accum).
  pred1_f32, _, _ = reservoir_forward_ref(t1, y1, params1, WARM1)
  err_prec = float(jnp.max(jnp.abs(pred1 - pred1_f32)))
  assert jnp.allclose(pred1, pred1_f32, atol=5e-2, rtol=5e-2), err_prec

  # --- Config 2: long horizon -> fori_loop kernel path, f32 MXU operands -----
  T2, WARM2 = 384, 376
  params2 = make_params(kp2, DIM, N)
  t2 = jnp.linspace(0.0, 1.0, T2, dtype=_F32)
  y2 = jax.random.normal(ky2, (DIM, T2), _F32)

  pred2, _, _ = reservoir_forward(t2, y2, params2, WARM2,
                                  mxu_dtype=jnp.float32)
  pred2 = jax.block_until_ready(pred2)
  assert pred2.shape == (DIM, T2), pred2.shape
  pred2_f32, _, _ = reservoir_forward_ref(t2, y2, params2, WARM2)
  err_long = float(jnp.max(jnp.abs(pred2 - pred2_f32)))
  assert jnp.allclose(pred2, pred2_f32, atol=2e-3, rtol=2e-3), err_long

  print("KERNEL_OK")
</pallas_src>

<mosaic_0001>
module attributes {stable_mosaic.version = 11 : i64} {
  func.func @_esn_unrolled_kernel(%arg0: memref<8x4xf32, #tpu.memory_space<vmem>>, %arg1: memref<4x128xf32, #tpu.memory_space<vmem>>, %arg2: memref<128x128xf32, #tpu.memory_space<vmem>>, %arg3: memref<128x4xf32, #tpu.memory_space<vmem>>, %arg4: memref<1x128xf32, #tpu.memory_space<vmem>>, %arg5: memref<1xf32, #tpu.memory_space<smem>>, %arg6: memref<16x4xf32, #tpu.memory_space<vmem>>, %arg7: memref<16x128xf32, #tpu.memory_space<vmem>>) attributes {dimension_semantics = [], scalar_prefetch = 0 : i64, scratch_operands = 1 : i64, tpu.core_type = #tpu.core_type<tc>} {
    %c0 = arith.constant 0 : index
    %c0_0 = arith.constant 0 : index
    %0 = vector.load %arg4[%c0, %c0_0] : memref<1x128xf32, #tpu.memory_space<vmem>>, vector<1x128xf32>
    %c0_1 = arith.constant 0 : index
    %c0_2 = arith.constant 0 : index
    %1 = vector.load %arg1[%c0_1, %c0_2] : memref<4x128xf32, #tpu.memory_space<vmem>>, vector<4x128xf32>
    %c0_3 = arith.constant 0 : index
    %2 = memref.load %arg5[%c0_3] : memref<1xf32, #tpu.memory_space<smem>>
    %3 = vector.broadcast %2 : f32 to vector<1x128xf32>
    %cst = arith.constant 1.000000e+00 : f32
    %4 = vector.broadcast %cst : f32 to vector<1x128xf32>
    %5 = arith.subf %4, %3 : vector<1x128xf32>
    %c0_4 = arith.constant 0 : index
    %c0_5 = arith.constant 0 : index
    %6 = vector.load %arg0[%c0_4, %c0_5] : memref<8x4xf32, #tpu.memory_space<vmem>>, vector<8x4xf32>
    %cst_6 = arith.constant dense<0.000000e+00> : vector<8x128xf32>
    %7 = tpu.matmul %6, %1, %cst_6 {dimension_numbers = #tpu.dot_dimension_numbers<[1], [0], [0], [1], [0, 0, 1, 1], [], []>} : vector<8x4xf32>, vector<4x128xf32>, vector<8x128xf32> -> vector<8x128xf32>
    %8 = vector.broadcast %0 : vector<1x128xf32> to vector<8x128xf32>
    %9 = arith.addf %7, %8 : vector<8x128xf32>
    %c0_7 = arith.constant 0 : index
    %c0_8 = arith.constant 0 : index
    %10 = vector.load %arg2[%c0_7, %c0_8] : memref<128x128xf32, #tpu.memory_space<vmem>>, vector<128x128xf32>
    %c0_9 = arith.constant 0 : index
    %c0_10 = arith.constant 0 : index
    %11 = vector.load %arg3[%c0_9, %c0_10] : memref<128x4xf32, #tpu.memory_space<vmem>>, vector<128x4xf32>
    %cst_11 = arith.constant dense<0.000000e+00> : vector<128x128xf32>
    %12 = tpu.matmul %11, %1, %cst_11 {dimension_numbers = #tpu.dot_dimension_numbers<[1], [0], [0], [1], [0, 0, 1, 1], [], []>} : vector<128x4xf32>, vector<4x128xf32>, vector<128x128xf32> -> vector<128x128xf32>
    %13 = arith.addf %10, %12 : vector<128x128xf32>
    %14 = arith.truncf %10 : vector<128x128xf32> to vector<128x128xbf16>
    %15 = arith.truncf %13 : vector<128x128xf32> to vector<128x128xbf16>
    %cst_12 = arith.constant 0.000000e+00 : f32
    %16 = vector.broadcast %cst_12 : f32 to vector<1x128xf32>
    %17 = vector.extract_strided_slice %9 {offsets = [0, 0], sizes = [1, 128], strides = [1, 1]} : vector<8x128xf32> to vector<1x128xf32>
    %18 = arith.truncf %16 : vector<1x128xf32> to vector<1x128xbf16>
    %cst_13 = arith.constant dense<0.000000e+00> : vector<1x128xf32>
    %19 = tpu.matmul %18, %14, %cst_13 {dimension_numbers = #tpu.dot_dimension_numbers<[1], [0], [0], [1], [0, 0, 1, 1], [], []>} : vector<1x128xbf16>, vector<128x128xbf16>, vector<1x128xf32> -> vector<1x128xf32>
    %20 = arith.addf %17, %19 : vector<1x128xf32>
    %21 = arith.mulf %5, %16 : vector<1x128xf32>
    %22 = math.tanh %20 : vector<1x128xf32>
    %23 = arith.mulf %3, %22 : vector<1x128xf32>
    %24 = arith.addf %21, %23 : vector<1x128xf32>
    %c0_14 = arith.constant 0 : index
    %c0_15 = arith.constant 0 : index
    %25 = vector.load %arg7[%c0_14, %c0_15] : memref<16x128xf32, #tpu.memory_space<vmem>>, vector<1x128xf32>
    tpu.vector_store %arg7[%c0_14, %c0_15], %24 {strides = array<i32>} : memref<16x128xf32, #tpu.memory_space<vmem>>, vector<1x128xf32>,
    %26 = vector.extract_strided_slice %9 {offsets = [1, 0], sizes = [1, 128], strides = [1, 1]} : vector<8x128xf32> to vector<1x128xf32>
    %27 = arith.truncf %24 : vector<1x128xf32> to vector<1x128xbf16>
    %cst_16 = arith.constant dense<0.000000e+00> : vector<1x128xf32>
    %28 = tpu.matmul %27, %14, %cst_16 {dimension_numbers = #tpu.dot_dimension_numbers<[1], [0], [0], [1], [0, 0, 1, 1], [], []>} : vector<1x128xbf16>, vector<128x128xbf16>, vector<1x128xf32> -> vector<1x128xf32>
    %29 = arith.addf %26, %28 : vector<1x128xf32>
    %30 = arith.mulf %5, %24 : vector<1x128xf32>
    %31 = math.tanh %29 : vector<1x128xf32>
    %32 = arith.mulf %3, %31 : vector<1x128xf32>
    %33 = arith.addf %30, %32 : vector<1x128xf32>
    %c1 = arith.constant 1 : index
    %c0_17 = arith.constant 0 : index
    %34 = vector.load %arg7[%c1, %c0_17] : memref<16x128xf32, #tpu.memory_space<vmem>>, vector<1x128xf32>
    tpu.vector_store %arg7[%c1, %c0_17], %33 {strides = array<i32>} : memref<16x128xf32, #tpu.memory_space<vmem>>, vector<1x128xf32>,
    %35 = vector.extract_strided_slice %9 {offsets = [2, 0], sizes = [1, 128], strides = [1, 1]} : vector<8x128xf32> to vector<1x128xf32>
    %36 = arith.truncf %33 : vector<1x128xf32> to vector<1x128xbf16>
    %cst_18 = arith.constant dense<0.000000e+00> : vector<1x128xf32>
    %37 = tpu.matmul %36, %14, %cst_18 {dimension_numbers = #tpu.dot_dimension_numbers<[1], [0], [0], [1], [0, 0, 1, 1], [], []>} : vector<1x128xbf16>, vector<128x128xbf16>, vector<1x128xf32> -> vector<1x128xf32>
    %38 = arith.addf %35, %37 : vector<1x128xf32>
    %39 = arith.mulf %5, %33 : vector<1x128xf32>
    %40 = math.tanh %38 : vector<1x128xf32>
    %41 = arith.mulf %3, %40 : vector<1x128xf32>
    %42 = arith.addf %39, %41 : vector<1x128xf32>
    %c2 = arith.constant 2 : index
    %c0_19 = arith.constant 0 : index
    %43 = vector.load %arg7[%c2, %c0_19] : memref<16x128xf32, #tpu.memory_space<vmem>>, vector<1x128xf32>
    tpu.vector_store %arg7[%c2, %c0_19], %42 {strides = array<i32>} : memref<16x128xf32, #tpu.memory_space<vmem>>, vector<1x128xf32>,
    %44 = vector.extract_strided_slice %9 {offsets = [3, 0], sizes = [1, 128], strides = [1, 1]} : vector<8x128xf32> to vector<1x128xf32>
    %45 = arith.truncf %42 : vector<1x128xf32> to vector<1x128xbf16>
    %cst_20 = arith.constant dense<0.000000e+00> : vector<1x128xf32>
    %46 = tpu.matmul %45, %14, %cst_20 {dimension_numbers = #tpu.dot_dimension_numbers<[1], [0], [0], [1], [0, 0, 1, 1], [], []>} : vector<1x128xbf16>, vector<128x128xbf16>, vector<1x128xf32> -> vector<1x128xf32>
    %47 = arith.addf %44, %46 : vector<1x128xf32>
    %48 = arith.mulf %5, %42 : vector<1x128xf32>
    %49 = math.tanh %47 : vector<1x128xf32>
    %50 = arith.mulf %3, %49 : vector<1x128xf32>
    %51 = arith.addf %48, %50 : vector<1x128xf32>
    %c3 = arith.constant 3 : index
    %c0_21 = arith.constant 0 : index
    %52 = vector.load %arg7[%c3, %c0_21] : memref<16x128xf32, #tpu.memory_space<vmem>>, vector<1x128xf32>
    tpu.vector_store %arg7[%c3, %c0_21], %51 {strides = array<i32>} : memref<16x128xf32, #tpu.memory_space<vmem>>, vector<1x128xf32>,
    %53 = vector.extract_strided_slice %9 {offsets = [4, 0], sizes = [1, 128], strides = [1, 1]} : vector<8x128xf32> to vector<1x128xf32>
    %54 = arith.truncf %51 : vector<1x128xf32> to vector<1x128xbf16>
    %cst_22 = arith.constant dense<0.000000e+00> : vector<1x128xf32>
    %55 = tpu.matmul %54, %14, %cst_22 {dimension_numbers = #tpu.dot_dimension_numbers<[1], [0], [0], [1], [0, 0, 1, 1], [], []>} : vector<1x128xbf16>, vector<128x128xbf16>, vector<1x128xf32> -> vector<1x128xf32>
    %56 = arith.addf %53, %55 : vector<1x128xf32>
    %57 = arith.mulf %5, %51 : vector<1x128xf32>
    %58 = math.tanh %56 : vector<1x128xf32>
    %59 = arith.mulf %3, %58 : vector<1x128xf32>
    %60 = arith.addf %57, %59 : vector<1x128xf32>
    %c4 = arith.constant 4 : index
    %c0_23 = arith.constant 0 : index
    %61 = vector.load %arg7[%c4, %c0_23] : memref<16x128xf32, #tpu.memory_space<vmem>>, vector<1x128xf32>
    tpu.vector_store %arg7[%c4, %c0_23], %60 {strides = array<i32>} : memref<16x128xf32, #tpu.memory_space<vmem>>, vector<1x128xf32>,
    %62 = vector.extract_strided_slice %9 {offsets = [5, 0], sizes = [1, 128], strides = [1, 1]} : vector<8x128xf32> to vector<1x128xf32>
    %63 = arith.truncf %60 : vector<1x128xf32> to vector<1x128xbf16>
    %cst_24 = arith.constant dense<0.000000e+00> : vector<1x128xf32>
    %64 = tpu.matmul %63, %14, %cst_24 {dimension_numbers = #tpu.dot_dimension_numbers<[1], [0], [0], [1], [0, 0, 1, 1], [], []>} : vector<1x128xbf16>, vector<128x128xbf16>, vector<1x128xf32> -> vector<1x128xf32>
    %65 = arith.addf %62, %64 : vector<1x128xf32>
    %66 = arith.mulf %5, %60 : vector<1x128xf32>
    %67 = math.tanh %65 : vector<1x128xf32>
    %68 = arith.mulf %3, %67 : vector<1x128xf32>
    %69 = arith.addf %66, %68 : vector<1x128xf32>
    %c5 = arith.constant 5 : index
    %c0_25 = arith.constant 0 : index
    %70 = vector.load %arg7[%c5, %c0_25] : memref<16x128xf32, #tpu.memory_space<vmem>>, vector<1x128xf32>
    tpu.vector_store %arg7[%c5, %c0_25], %69 {strides = array<i32>} : memref<16x128xf32, #tpu.memory_space<vmem>>, vector<1x128xf32>,
    %71 = vector.extract_strided_slice %9 {offsets = [6, 0], sizes = [1, 128], strides = [1, 1]} : vector<8x128xf32> to vector<1x128xf32>
    %72 = arith.truncf %69 : vector<1x128xf32> to vector<1x128xbf16>
    %cst_26 = arith.constant dense<0.000000e+00> : vector<1x128xf32>
    %73 = tpu.matmul %72, %14, %cst_26 {dimension_numbers = #tpu.dot_dimension_numbers<[1], [0], [0], [1], [0, 0, 1, 1], [], []>} : vector<1x128xbf16>, vector<128x128xbf16>, vector<1x128xf32> -> vector<1x128xf32>
    %74 = arith.addf %71, %73 : vector<1x128xf32>
    %75 = arith.mulf %5, %69 : vector<1x128xf32>
    %76 = math.tanh %74 : vector<1x128xf32>
    %77 = arith.mulf %3, %76 : vector<1x128xf32>
    %78 = arith.addf %75, %77 : vector<1x128xf32>
    %c6 = arith.constant 6 : index
    %c0_27 = arith.constant 0 : index
    %79 = vector.load %arg7[%c6, %c0_27] : memref<16x128xf32, #tpu.memory_space<vmem>>, vector<1x128xf32>
    tpu.vector_store %arg7[%c6, %c0_27], %78 {strides = array<i32>} : memref<16x128xf32, #tpu.memory_space<vmem>>, vector<1x128xf32>,
    %80 = vector.extract_strided_slice %9 {offsets = [7, 0], sizes = [1, 128], strides = [1, 1]} : vector<8x128xf32> to vector<1x128xf32>
    %81 = arith.truncf %78 : vector<1x128xf32> to vector<1x128xbf16>
    %cst_28 = arith.constant dense<0.000000e+00> : vector<1x128xf32>
    %82 = tpu.matmul %81, %14, %cst_28 {dimension_numbers = #tpu.dot_dimension_numbers<[1], [0], [0], [1], [0, 0, 1, 1], [], []>} : vector<1x128xbf16>, vector<128x128xbf16>, vector<1x128xf32> -> vector<1x128xf32>
    %83 = arith.addf %80, %82 : vector<1x128xf32>
    %84 = arith.mulf %5, %78 : vector<1x128xf32>
    %85 = math.tanh %83 : vector<1x128xf32>
    %86 = arith.mulf %3, %85 : vector<1x128xf32>
    %87 = arith.addf %84, %86 : vector<1x128xf32>
    %c7 = arith.constant 7 : index
    %c0_29 = arith.constant 0 : index
    %88 = vector.load %arg7[%c7, %c0_29] : memref<16x128xf32, #tpu.memory_space<vmem>>, vector<1x128xf32>
    tpu.vector_store %arg7[%c7, %c0_29], %87 {strides = array<i32>} : memref<16x128xf32, #tpu.memory_space<vmem>>, vector<1x128xf32>,
    %89 = arith.truncf %87 : vector<1x128xf32> to vector<1x128xbf16>
    %cst_30 = arith.constant dense<0.000000e+00> : vector<1x128xf32>
    %90 = tpu.matmul %89, %15, %cst_30 {dimension_numbers = #tpu.dot_dimension_numbers<[1], [0], [0], [1], [0, 0, 1, 1], [], []>} : vector<1x128xbf16>, vector<128x128xbf16>, vector<1x128xf32> -> vector<1x128xf32>
    %91 = arith.addf %90, %0 : vector<1x128xf32>
    %92 = arith.mulf %5, %87 : vector<1x128xf32>
    %93 = math.tanh %91 : vector<1x128xf32>
    %94 = arith.mulf %3, %93 : vector<1x128xf32>
    %95 = arith.addf %92, %94 : vector<1x128xf32>
    %c8 = arith.constant 8 : index
    %c0_31 = arith.constant 0 : index
    %96 = vector.load %arg7[%c8, %c0_31] : memref<16x128xf32, #tpu.memory_space<vmem>>, vector<1x128xf32>
    tpu.vector_store %arg7[%c8, %c0_31], %95 {strides = array<i32>} : memref<16x128xf32, #tpu.memory_space<vmem>>, vector<1x128xf32>,
    %97 = arith.truncf %95 : vector<1x128xf32> to vector<1x128xbf16>
    %cst_32 = arith.constant dense<0.000000e+00> : vector<1x128xf32>
    %98 = tpu.matmul %97, %15, %cst_32 {dimension_numbers = #tpu.dot_dimension_numbers<[1], [0], [0], [1], [0, 0, 1, 1], [], []>} : vector<1x128xbf16>, vector<128x128xbf16>, vector<1x128xf32> -> vector<1x128xf32>
    %99 = arith.addf %98, %0 : vector<1x128xf32>
    %100 = arith.mulf %5, %95 : vector<1x128xf32>
    %101 = math.tanh %99 : vector<1x128xf32>
    %102 = arith.mulf %3, %101 : vector<1x128xf32>
    %103 = arith.addf %100, %102 : vector<1x128xf32>
    %c9 = arith.constant 9 : index
    %c0_33 = arith.constant 0 : index
    %104 = vector.load %arg7[%c9, %c0_33] : memref<16x128xf32, #tpu.memory_space<vmem>>, vector<1x128xf32>
    tpu.vector_store %arg7[%c9, %c0_33], %103 {strides = array<i32>} : memref<16x128xf32, #tpu.memory_space<vmem>>, vector<1x128xf32>,
    %105 = arith.truncf %103 : vector<1x128xf32> to vector<1x128xbf16>
    %cst_34 = arith.constant dense<0.000000e+00> : vector<1x128xf32>
    %106 = tpu.matmul %105, %15, %cst_34 {dimension_numbers = #tpu.dot_dimension_numbers<[1], [0], [0], [1], [0, 0, 1, 1], [], []>} : vector<1x128xbf16>, vector<128x128xbf16>, vector<1x128xf32> -> vector<1x128xf32>
    %107 = arith.addf %106, %0 : vector<1x128xf32>
    %108 = arith.mulf %5, %103 : vector<1x128xf32>
    %109 = math.tanh %107 : vector<1x128xf32>
    %110 = arith.mulf %3, %109 : vector<1x128xf32>
    %111 = arith.addf %108, %110 : vector<1x128xf32>
    %c10 = arith.constant 10 : index
    %c0_35 = arith.constant 0 : index
    %112 = vector.load %arg7[%c10, %c0_35] : memref<16x128xf32, #tpu.memory_space<vmem>>, vector<1x128xf32>
    tpu.vector_store %arg7[%c10, %c0_35], %111 {strides = array<i32>} : memref<16x128xf32, #tpu.memory_space<vmem>>, vector<1x128xf32>,
    %113 = arith.truncf %111 : vector<1x128xf32> to vector<1x128xbf16>
    %cst_36 = arith.constant dense<0.000000e+00> : vector<1x128xf32>
    %114 = tpu.matmul %113, %15, %cst_36 {dimension_numbers = #tpu.dot_dimension_numbers<[1], [0], [0], [1], [0, 0, 1, 1], [], []>} : vector<1x128xbf16>, vector<128x128xbf16>, vector<1x128xf32> -> vector<1x128xf32>
    %115 = arith.addf %114, %0 : vector<1x128xf32>
    %116 = arith.mulf %5, %111 : vector<1x128xf32>
    %117 = math.tanh %115 : vector<1x128xf32>
    %118 = arith.mulf %3, %117 : vector<1x128xf32>
    %119 = arith.addf %116, %118 : vector<1x128xf32>
    %c11 = arith.constant 11 : index
    %c0_37 = arith.constant 0 : index
    %120 = vector.load %arg7[%c11, %c0_37] : memref<16x128xf32, #tpu.memory_space<vmem>>, vector<1x128xf32>
    tpu.vector_store %arg7[%c11, %c0_37], %119 {strides = array<i32>} : memref<16x128xf32, #tpu.memory_space<vmem>>, vector<1x128xf32>,
    %121 = arith.truncf %119 : vector<1x128xf32> to vector<1x128xbf16>
    %cst_38 = arith.constant dense<0.000000e+00> : vector<1x128xf32>
    %122 = tpu.matmul %121, %15, %cst_38 {dimension_numbers = #tpu.dot_dimension_numbers<[1], [0], [0], [1], [0, 0, 1, 1], [], []>} : vector<1x128xbf16>, vector<128x128xbf16>, vector<1x128xf32> -> vector<1x128xf32>
    %123 = arith.addf %122, %0 : vector<1x128xf32>
    %124 = arith.mulf %5, %119 : vector<1x128xf32>
    %125 = math.tanh %123 : vector<1x128xf32>
    %126 = arith.mulf %3, %125 : vector<1x128xf32>
    %127 = arith.addf %124, %126 : vector<1x128xf32>
    %c12 = arith.constant 12 : index
    %c0_39 = arith.constant 0 : index
    %128 = vector.load %arg7[%c12, %c0_39] : memref<16x128xf32, #tpu.memory_space<vmem>>, vector<1x128xf32>
    tpu.vector_store %arg7[%c12, %c0_39], %127 {strides = array<i32>} : memref<16x128xf32, #tpu.memory_space<vmem>>, vector<1x128xf32>,
    %129 = arith.truncf %127 : vector<1x128xf32> to vector<1x128xbf16>
    %cst_40 = arith.constant dense<0.000000e+00> : vector<1x128xf32>
    %130 = tpu.matmul %129, %15, %cst_40 {dimension_numbers = #tpu.dot_dimension_numbers<[1], [0], [0], [1], [0, 0, 1, 1], [], []>} : vector<1x128xbf16>, vector<128x128xbf16>, vector<1x128xf32> -> vector<1x128xf32>
    %131 = arith.addf %130, %0 : vector<1x128xf32>
    %132 = arith.mulf %5, %127 : vector<1x128xf32>
    %133 = math.tanh %131 : vector<1x128xf32>
    %134 = arith.mulf %3, %133 : vector<1x128xf32>
    %135 = arith.addf %132, %134 : vector<1x128xf32>
    %c13 = arith.constant 13 : index
    %c0_41 = arith.constant 0 : index
    %136 = vector.load %arg7[%c13, %c0_41] : memref<16x128xf32, #tpu.memory_space<vmem>>, vector<1x128xf32>
    tpu.vector_store %arg7[%c13, %c0_41], %135 {strides = array<i32>} : memref<16x128xf32, #tpu.memory_space<vmem>>, vector<1x128xf32>,
    %137 = arith.truncf %135 : vector<1x128xf32> to vector<1x128xbf16>
    %cst_42 = arith.constant dense<0.000000e+00> : vector<1x128xf32>
    %138 = tpu.matmul %137, %15, %cst_42 {dimension_numbers = #tpu.dot_dimension_numbers<[1], [0], [0], [1], [0, 0, 1, 1], [], []>} : vector<1x128xbf16>, vector<128x128xbf16>, vector<1x128xf32> -> vector<1x128xf32>
    %139 = arith.addf %138, %0 : vector<1x128xf32>
    %140 = arith.mulf %5, %135 : vector<1x128xf32>
    %141 = math.tanh %139 : vector<1x128xf32>
    %142 = arith.mulf %3, %141 : vector<1x128xf32>
    %143 = arith.addf %140, %142 : vector<1x128xf32>
    %c14 = arith.constant 14 : index
    %c0_43 = arith.constant 0 : index
    %144 = vector.load %arg7[%c14, %c0_43] : memref<16x128xf32, #tpu.memory_space<vmem>>, vector<1x128xf32>
    tpu.vector_store %arg7[%c14, %c0_43], %143 {strides = array<i32>} : memref<16x128xf32, #tpu.memory_space<vmem>>, vector<1x128xf32>,
    %145 = arith.truncf %143 : vector<1x128xf32> to vector<1x128xbf16>
    %cst_44 = arith.constant dense<0.000000e+00> : vector<1x128xf32>
    %146 = tpu.matmul %145, %15, %cst_44 {dimension_numbers = #tpu.dot_dimension_numbers<[1], [0], [0], [1], [0, 0, 1, 1], [], []>} : vector<1x128xbf16>, vector<128x128xbf16>, vector<1x128xf32> -> vector<1x128xf32>
    %147 = arith.addf %146, %0 : vector<1x128xf32>
    %148 = arith.mulf %5, %143 : vector<1x128xf32>
    %149 = math.tanh %147 : vector<1x128xf32>
    %150 = arith.mulf %3, %149 : vector<1x128xf32>
    %151 = arith.addf %148, %150 : vector<1x128xf32>
    %c15 = arith.constant 15 : index
    %c0_45 = arith.constant 0 : index
    %152 = vector.load %arg7[%c15, %c0_45] : memref<16x128xf32, #tpu.memory_space<vmem>>, vector<1x128xf32>
    tpu.vector_store %arg7[%c15, %c0_45], %151 {strides = array<i32>} : memref<16x128xf32, #tpu.memory_space<vmem>>, vector<1x128xf32>,
    %c0_46 = arith.constant 0 : index
    %c0_47 = arith.constant 0 : index
    %153 = vector.load %arg7[%c0_46, %c0_47] : memref<16x128xf32, #tpu.memory_space<vmem>>, vector<16x128xf32>
    %c0_48 = arith.constant 0 : index
    %c0_49 = arith.constant 0 : index
    %154 = vector.load %arg3[%c0_48, %c0_49] : memref<128x4xf32, #tpu.memory_space<vmem>>, vector<128x4xf32>
    %cst_50 = arith.constant dense<0.000000e+00> : vector<16x4xf32>
    %155 = tpu.matmul %153, %154, %cst_50 {dimension_numbers = #tpu.dot_dimension_numbers<[1], [0], [0], [1], [0, 0, 1, 1], [], []>} : vector<16x128xf32>, vector<128x4xf32>, vector<16x4xf32> -> vector<16x4xf32>
    %c0_51 = arith.constant 0 : index
    %c0_52 = arith.constant 0 : index
    %156 = vector.load %arg6[%c0_51, %c0_52] : memref<16x4xf32, #tpu.memory_space<vmem>>, vector<16x4xf32>
    tpu.vector_store %arg6[%c0_51, %c0_52], %155 {strides = array<i32>} : memref<16x4xf32, #tpu.memory_space<vmem>>, vector<16x4xf32>,
    return
  }
}

</mosaic_0001>

<llo_original>
// kernel: _forward_impl.1
$region0: #{_forward_impl.1}
  #allocation0 [shape = 'u32[]', space=smem, size = 0x4, offset = 0x4, fixed_abs, tag = 'smem constant byte address 0x4 - core index']
  #allocation1 [shape = 'u32[144,128]{1,0:T(1,128)}', space=vmem, size = 0x12000, scoped, tag = 'internal scratch']
  #allocation2 [shape = 'f32[16,128]{1,0:T(8,128)}', space=vmem, size = 0x2000, scoped, tag = 'scratch operand']
  #allocation3 [shape = 'f32[1]{0:T(128)S(6)}', space=smem, size = 0x200, scoped, tag = 'scoped memory for _forward_impl.1']
  %s0 = inlined_call_operand.vmem [shape: f32[8,4], index: 0, kind: input, shape index: {}]
  %s1 = inlined_call_operand.vmem [shape: f32[4,128], index: 1, kind: input, shape index: {}]
  %s2 = inlined_call_operand.vmem [shape: f32[128,128], index: 2, kind: input, shape index: {}]
  %s3 = inlined_call_operand.vmem [shape: f32[128,4], index: 3, kind: input, shape index: {}]
  %s4 = inlined_call_operand.vmem [shape: f32[1,128], index: 4, kind: input, shape index: {}]
  %s5 = inlined_call_operand.<no memory space> [shape: f32[1], index: 5, kind: input, shape index: {}]
  %s6 = inlined_call_operand.vmem [shape: f32[16,4], index: 6, kind: output, shape index: {}]
  %s7 = sld [smem:[#allocation0]]
  $region34: #{_forward_impl.1} parent=0
    _
  %s9 = ssub.s32 1, %s7
  %s10 = scalar_select 0, %s9, %s7
  %11 = sst [smem:[#allocation3]] %s5
  // Predicated region
  $region2: #{_forward_impl.1} parent=0 // pred_check
    _
  $region3: #{_forward_impl.1} parent=0 // pred_check_branch
    %13 = sbr.rel (0) target = $region5
  $region4: #{_forward_impl.1} parent=0 // pred_region
    _
  $region5: #{_forward_impl.1} parent=0 // pred_fallthru
    _
  // Predicated region
  $region6: #{_forward_impl.1} parent=0 // pred_check
    _
  $region7: #{_forward_impl.1} parent=0 // pred_check_branch
    %15 = sbr.rel (0) target = $region9
  $region8: #{_forward_impl.1} parent=0 // pred_region
    _
  $region9: #{_forward_impl.1} parent=0 // pred_fallthru
    _
  // Predicated region
  $region10: #{_forward_impl.1} parent=0 // pred_check
    _
  $region11: #{_forward_impl.1} parent=0 // pred_check_branch
    %17 = sbr.rel (0) target = $region13
  $region12: #{_forward_impl.1} parent=0 // pred_region
    _
  $region13: #{_forward_impl.1} parent=0 // pred_fallthru
    _
  // Predicated region
  $region14: #{_forward_impl.1} parent=0 // pred_check
    _
  $region15: #{_forward_impl.1} parent=0 // pred_check_branch
    %19 = sbr.rel (0) target = $region17
  $region16: #{_forward_impl.1} parent=0 // pred_region
    _
  $region17: #{_forward_impl.1} parent=0 // pred_fallthru
    _
  // Predicated region
  $region18: #{_forward_impl.1} parent=0 // pred_check
    _
  $region19: #{_forward_impl.1} parent=0 // pred_check_branch
    %21 = sbr.rel (0) target = $region21
  $region20: #{_forward_impl.1} parent=0 // pred_region
    _
  $region21: #{_forward_impl.1} parent=0 // pred_fallthru
    _
  // Predicated region
  $region22: #{_forward_impl.1} parent=0 // pred_check
    _
  $region23: #{_forward_impl.1} parent=0 // pred_check_branch
    %23 = sbr.rel (0) target = $region25
  $region24: #{_forward_impl.1} parent=0 // pred_region
    _
  $region25: #{_forward_impl.1} parent=0 // pred_fallthru
    _
  %v25 = vld [vmem:[%s4] sm:$0x1]
  %v26 = vld [vmem:[%s1] sm:$0xf]
  %s27 = sld [smem:[#allocation3]]
  %v28 = vstv %s27
  %v29 = vsub.f32 1.0, %v28
  %v30 = vld [vmem:[%s0] sm:$0xff]
  %v32 = vlaneseq
  %v33 = vshrl.u32 %v32, 7
  %v34 = vsub.s32 0, %v33
  %v35 = vrot.slane %v25, %v34
  %vm37 = vcmask 31744
  %v39 = vsel %vm37, %v30, 0
  %vm41 = vcmask 1043456
  %v43 = vsel %vm41, %v26, 0
  %45 = vmatprep.subr.mxu0 0.0
  %46 = vmatpush1.msra.mxu0 %v43
  %47 = vmatprep.subr.mxu0 0.0
  %48 = vmatpush1.msra.mxu0 0.0
  %49 = vmatprep.subr.mxu0 0.0
  %50 = vmatpush1.msra.mxu0 0.0
  %51 = vmatprep.subr.mxu0 0.0
  %52 = vmatpush1.msra.mxu0 0.0
  %53 = vmatprep.subr.mxu0 0.0
  %54 = vmatpush1.msra.mxu0 0.0
  %55 = vmatprep.subr.mxu0 0.0
  %56 = vmatpush1.msra.mxu0 0.0
  %57 = vmatprep.subr.mxu0 0.0
  %58 = vmatpush1.msra.mxu0 0.0
  %59 = vmatprep.subr.mxu0 0.0
  %60 = vmatpush1.msra.mxu0 0.0
  %61 = vmatprep.subr.mxu0 0.0
  %62 = vmatpush1.msra.mxu0 0.0
  %63 = vmatprep.subr.mxu0 0.0
  %64 = vmatpush1.msra.mxu0 0.0
  %65 = vmatprep.subr.mxu0 0.0
  %66 = vmatpush1.msra.mxu0 0.0
  %67 = vmatprep.subr.mxu0 0.0
  %68 = vmatpush1.msra.mxu0 0.0
  %69 = vmatprep.subr.mxu0 0.0
  %70 = vmatpush1.msra.mxu0 0.0
  %71 = vmatprep.subr.mxu0 0.0
  %72 = vmatpush1.msra.mxu0 0.0
  %73 = vmatprep.subr.mxu0 0.0
  %74 = vmatpush1.msra.mxu0 0.0
  %75 = vmatprep.subr.mxu0 0.0
  %76 = vmatpush1.msra.mxu0 0.0
  %77 = vmatprep.subr.mxu0 0.0
  %78 = vmatpush1.msra.mxu0 0.0
  %79 = vmatprep.subr.mxu0 0.0
  %80 = vmatpush1.msra.mxu0 0.0
  %81 = vmatprep.subr.mxu0 0.0
  %82 = vmatpush1.msra.mxu0 0.0
  %83 = vmatprep.subr.mxu0 0.0
  %84 = vmatpush1.msra.mxu0 0.0
  %85 = vmatprep.subr.mxu0 0.0
  %86 = vmatpush1.msra.mxu0 0.0
  %87 = vmatprep.subr.mxu0 0.0
  %88 = vmatpush1.msra.mxu0 0.0
  %89 = vmatprep.subr.mxu0 0.0
  %90 = vmatpush1.msra.mxu0 0.0
  %91 = vmatprep.subr.mxu0 0.0
  %92 = vmatpush1.msra.mxu0 0.0
  %93 = vmatprep.subr.mxu0 0.0
  %94 = vmatpush1.msra.mxu0 0.0
  %95 = vmatprep.subr.mxu0 0.0
  %96 = vmatpush1.msra.mxu0 0.0
  %97 = vmatprep.subr.mxu0 0.0
  %98 = vmatpush1.msra.mxu0 0.0
  %99 = vmatprep.subr.mxu0 0.0
  %100 = vmatpush1.msra.mxu0 0.0
  %101 = vmatprep.subr.mxu0 0.0
  %102 = vmatpush1.msra.mxu0 0.0
  %103 = vmatprep.subr.mxu0 0.0
  %104 = vmatpush1.msra.mxu0 0.0
  %105 = vmatprep.subr.mxu0 0.0
  %106 = vmatpush1.msra.mxu0 0.0
  %107 = vmatprep.subr.mxu0 0.0
  %108 = vmatpush1.msra.mxu0 0.0
  %109 = vmatprep.mubr.f32.mxu0 0.0
  %110 = vmatmul.mubr.f32.gmra.mrb[0].mxu0 %v39
  %v111 = vpop.f32.mrb[0].mxu0
  %v112 = vadd.f32 %v35, %v111
  %v113 = vpop.f32.mrb[0].mxu0
  %114 = vdwg.mxu0
  %v115 = vld [vmem:[%s2] sm:$0xff]
  %v116 = vld [vmem:[%s2 + $0x8] sm:$0xff]
  %v117 = vld [vmem:[%s2 + $0x10] sm:$0xff]
  %v118 = vld [vmem:[%s2 + $0x18] sm:$0xff]
  %v119 = vld [vmem:[%s2 + $0x20] sm:$0xff]
  %v120 = vld [vmem:[%s2 + $0x28] sm:$0xff]
  %v121 = vld [vmem:[%s2 + $0x30] sm:$0xff]
  %v122 = vld [vmem:[%s2 + $0x38] sm:$0xff]
  %v123 = vld [vmem:[%s2 + $0x40] sm:$0xff]
  %v124 = vld [vmem:[%s2 + $0x48] sm:$0xff]
  %v125 = vld [vmem:[%s2 + $0x50] sm:$0xff]
  %v126 = vld [vmem:[%s2 + $0x58] sm:$0xff]
  %v127 = vld [vmem:[%s2 + $0x60] sm:$0xff]
  %v128 = vld [vmem:[%s2 + $0x68] sm:$0xff]
  %v129 = vld [vmem:[%s2 + $0x70] sm:$0xff]
  %v130 = vld [vmem:[%s2 + $0x78] sm:$0xff]
  %v131 = vld [vmem:[%s3] sm:$0xff]
  %v132 = vld [vmem:[%s3 + $0x8] sm:$0xff]
  %v133 = vld [vmem:[%s3 + $0x10] sm:$0xff]
  %v134 = vld [vmem:[%s3 + $0x18] sm:$0xff]
  %v135 = vld [vmem:[%s3 + $0x20] sm:$0xff]
  %v136 = vld [vmem:[%s3 + $0x28] sm:$0xff]
  %v137 = vld [vmem:[%s3 + $0x30] sm:$0xff]
  %v138 = vld [vmem:[%s3 + $0x38] sm:$0xff]
  %v139 = vld [vmem:[%s3 + $0x40] sm:$0xff]
  %v140 = vld [vmem:[%s3 + $0x48] sm:$0xff]
  %v141 = vld [vmem:[%s3 + $0x50] sm:$0xff]
  %v142 = vld [vmem:[%s3 + $0x58] sm:$0xff]
  %v143 = vld [vmem:[%s3 + $0x60] sm:$0xff]
  %v144 = vld [vmem:[%s3 + $0x68] sm:$0xff]
  %v145 = vld [vmem:[%s3 + $0x70] sm:$0xff]
  %v146 = vld [vmem:[%s3 + $0x78] sm:$0xff]
  %v148 = vsel %vm37, %v131, 0
  %v151 = vsel %vm37, %v132, 0
  %v154 = vsel %vm37, %v133, 0
  %v157 = vsel %vm37, %v134, 0
  %v160 = vsel %vm37, %v135, 0
  %v163 = vsel %vm37, %v136, 0
  %v166 = vsel %vm37, %v137, 0
  %v169 = vsel %vm37, %v138, 0
  %v172 = vsel %vm37, %v139, 0
  %v175 = vsel %vm37, %v140, 0
  %v178 = vsel %vm37, %v141, 0
  %v181 = vsel %vm37, %v142, 0
  %v184 = vsel %vm37, %v143, 0
  %v187 = vsel %vm37, %v144, 0
  %v190 = vsel %vm37, %v145, 0
  %v193 = vsel %vm37, %v146, 0
  %195 = vmatprep.subr.mxu0 0.0
  %196 = vmatpush1.msra.mxu0 %v43
  %197 = vmatprep.subr.mxu0 0.0
  %198 = vmatpush1.msra.mxu0 0.0
  %199 = vmatprep.subr.mxu0 0.0
  %200 = vmatpush1.msra.mxu0 0.0
  %201 = vmatprep.subr.mxu0 0.0
  %202 = vmatpush1.msra.mxu0 0.0
  %203 = vmatprep.subr.mxu0 0.0
  %204 = vmatpush1.msra.mxu0 0.0
  %205 = vmatprep.subr.mxu0 0.0
  %206 = vmatpush1.msra.mxu0 0.0
  %207 = vmatprep.subr.mxu0 0.0
  %208 = vmatpush1.msra.mxu0 0.0
  %209 = vmatprep.subr.mxu0 0.0
  %210 = vmatpush1.msra.mxu0 0.0
  %211 = vmatprep.subr.mxu0 0.0
  %212 = vmatpush1.msra.mxu0 0.0
  %213 = vmatprep.subr.mxu0 0.0
  %214 = vmatpush1.msra.mxu0 0.0
  %215 = vmatprep.subr.mxu0 0.0
  %216 = vmatpush1.msra.mxu0 0.0
  %217 = vmatprep.subr.mxu0 0.0
  %218 = vmatpush1.msra.mxu0 0.0
  %219 = vmatprep.subr.mxu0 0.0
  %220 = vmatpush1.msra.mxu0 0.0
  %221 = vmatprep.subr.mxu0 0.0
  %222 = vmatpush1.msra.mxu0 0.0
  %223 = vmatprep.subr.mxu0 0.0
  %224 = vmatpush1.msra.mxu0 0.0
  %225 = vmatprep.subr.mxu0 0.0
  %226 = vmatpush1.msra.mxu0 0.0
  %227 = vmatprep.subr.mxu0 0.0
  %228 = vmatpush1.msra.mxu0 0.0
  %229 = vmatprep.subr.mxu0 0.0
  %230 = vmatpush1.msra.mxu0 0.0
  %231 = vmatprep.subr.mxu0 0.0
  %232 = vmatpush1.msra.mxu0 0.0
  %233 = vmatprep.subr.mxu0 0.0
  %234 = vmatpush1.msra.mxu0 0.0
  %235 = vmatprep.subr.mxu0 0.0
  %236 = vmatpush1.msra.mxu0 0.0
  %237 = vmatprep.subr.mxu0 0.0
  %238 = vmatpush1.msra.mxu0 0.0
  %239 = vmatprep.subr.mxu0 0.0
  %240 = vmatpush1.msra.mxu0 0.0
  %241 = vmatprep.subr.mxu0 0.0
  %242 = vmatpush1.msra.mxu0 0.0
  %243 = vmatprep.subr.mxu0 0.0
  %244 = vmatpush1.msra.mxu0 0.0
  %245 = vmatprep.subr.mxu0 0.0
  %246 = vmatpush1.msra.mxu0 0.0
  %247 = vmatprep.subr.mxu0 0.0
  %248 = vmatpush1.msra.mxu0 0.0
  %249 = vmatprep.subr.mxu0 0.0
  %250 = vmatpush1.msra.mxu0 0.0
  %251 = vmatprep.subr.mxu0 0.0
  %252 = vmatpush1.msra.mxu0 0.0
  %253 = vmatprep.subr.mxu0 0.0
  %254 = vmatpush1.msra.mxu0 0.0
  %255 = vmatprep.subr.mxu0 0.0
  %256 = vmatpush1.msra.mxu0 0.0
  %257 = vmatprep.subr.mxu0 0.0
  %258 = vmatpush1.msra.mxu0 0.0
  %259 = vmatprep.mubr.f32.mxu0 0.0
  %260 = vmatmul.mubr.f32.gmra.mrb[0].mxu0 %v148
  %v261 = vpop.f32.mrb[0].mxu0
  %v262 = vadd.f32 0.0, %v261
  %v263 = vpop.f32.mrb[0].mxu0
  %264 = vmatprep.mubr.f32.mxu0 0.0
  %265 = vmatmul.mubr.f32.gmra.mrb[0].mxu0 %v151
  %v266 = vpop.f32.mrb[0].mxu0
  %v267 = vadd.f32 0.0, %v266
  %v268 = vpop.f32.mrb[0].mxu0
  %269 = vmatprep.mubr.f32.mxu0 0.0
  %270 = vmatmul.mubr.f32.gmra.mrb[0].mxu0 %v154
  %v271 = vpop.f32.mrb[0].mxu0
  %v272 = vadd.f32 0.0, %v271
  %v273 = vpop.f32.mrb[0].mxu0
  %274 = vmatprep.mubr.f32.mxu0 0.0
  %275 = vmatmul.mubr.f32.gmra.mrb[0].mxu0 %v157
  %v276 = vpop.f32.mrb[0].mxu0
  %v277 = vadd.f32 0.0, %v276
  %v278 = vpop.f32.mrb[0].mxu0
  %279 = vmatprep.mubr.f32.mxu0 0.0
  %280 = vmatmul.mubr.f32.gmra.mrb[0].mxu0 %v160
  %v281 = vpop.f32.mrb[0].mxu0
  %v282 = vadd.f32 0.0, %v281
  %v283 = vpop.f32.mrb[0].mxu0
  %284 = vmatprep.mubr.f32.mxu0 0.0
  %285 = vmatmul.mubr.f32.gmra.mrb[0].mxu0 %v163
  %v286 = vpop.f32.mrb[0].mxu0
  %v287 = vadd.f32 0.0, %v286
  %v288 = vpop.f32.mrb[0].mxu0
  %289 = vmatprep.mubr.f32.mxu0 0.0
  %290 = vmatmul.mubr.f32.gmra.mrb[0].mxu0 %v166
  %v291 = vpop.f32.mrb[0].mxu0
  %v292 = vadd.f32 0.0, %v291
  %v293 = vpop.f32.mrb[0].mxu0
  %294 = vmatprep.mubr.f32.mxu0 0.0
  %295 = vmatmul.mubr.f32.gmra.mrb[0].mxu0 %v169
  %v296 = vpop.f32.mrb[0].mxu0
  %v297 = vadd.f32 0.0, %v296
  %v298 = vpop.f32.mrb[0].mxu0
  %299 = vmatprep.mubr.f32.mxu0 0.0
  %300 = vmatmul.mubr.f32.gmra.mrb[0].mxu0 %v172
  %v301 = vpop.f32.mrb[0].mxu0
  %v302 = vadd.f32 0.0, %v301
  %v303 = vpop.f32.mrb[0].mxu0
  %304 = vmatprep.mubr.f32.mxu0 0.0
  %305 = vmatmul.mubr.f32.gmra.mrb[0].mxu0 %v175
  %v306 = vpop.f32.mrb[0].mxu0
  %v307 = vadd.f32 0.0, %v306
  %v308 = vpop.f32.mrb[0].mxu0
  %309 = vmatprep.mubr.f32.mxu0 0.0
  %310 = vmatmul.mubr.f32.gmra.mrb[0].mxu0 %v178
  %v311 = vpop.f32.mrb[0].mxu0
  %v312 = vadd.f32 0.0, %v311
  %v313 = vpop.f32.mrb[0].mxu0
  %314 = vmatprep.mubr.f32.mxu0 0.0
  %315 = vmatmul.mubr.f32.gmra.mrb[0].mxu0 %v181
  %v316 = vpop.f32.mrb[0].mxu0
  %v317 = vadd.f32 0.0, %v316
  %v318 = vpop.f32.mrb[0].mxu0
  %319 = vmatprep.mubr.f32.mxu0 0.0
  %320 = vmatmul.mubr.f32.gmra.mrb[0].mxu0 %v184
  %v321 = vpop.f32.mrb[0].mxu0
  %v322 = vadd.f32 0.0, %v321
  %v323 = vpop.f32.mrb[0].mxu0
  %324 = vmatprep.mubr.f32.mxu0 0.0
  %325 = vmatmul.mubr.f32.gmra.mrb[0].mxu0 %v187
  %v326 = vpop.f32.mrb[0].mxu0
  %v327 = vadd.f32 0.0, %v326
  %v328 = vpop.f32.mrb[0].mxu0
  %329 = vmatprep.mubr.f32.mxu0 0.0
  %330 = vmatmul.mubr.f32.gmra.mrb[0].mxu0 %v190
  %v331 = vpop.f32.mrb[0].mxu0
  %v332 = vadd.f32 0.0, %v331
  %v333 = vpop.f32.mrb[0].mxu0
  %334 = vmatprep.mubr.f32.mxu0 0.0
  %335 = vmatmul.mubr.f32.gmra.mrb[0].mxu0 %v193
  %v336 = vpop.f32.mrb[0].mxu0
  %v337 = vadd.f32 0.0, %v336
  %v338 = vpop.f32.mrb[0].mxu0
  %339 = vdwg.mxu0
  %v340 = vadd.f32 %v115, %v262
  %v341 = vadd.f32 %v116, %v267
  %v342 = vadd.f32 %v117, %v272
  %v343 = vadd.f32 %v118, %v277
  %v344 = vadd.f32 %v119, %v282
  %v345 = vadd.f32 %v120, %v287
  %v346 = vadd.f32 %v121, %v292
  %v347 = vadd.f32 %v122, %v297
  %v348 = vadd.f32 %v123, %v302
  %v349 = vadd.f32 %v124, %v307
  %v350 = vadd.f32 %v125, %v312
  %v351 = vadd.f32 %v126, %v317
  %v352 = vadd.f32 %v127, %v322
  %v353 = vadd.f32 %v128, %v327
  %v354 = vadd.f32 %v129, %v332
  %v355 = vadd.f32 %v130, %v337
  %v356 = vpack.c.bf16 %v116, %v115
  %v357 = vpack.c.bf16 %v118, %v117
  %v358 = vpack.c.bf16 %v120, %v119
  %v359 = vpack.c.bf16 %v122, %v121
  %v360 = vpack.c.bf16 %v124, %v123
  %v361 = vpack.c.bf16 %v126, %v125
  %v362 = vpack.c.bf16 %v128, %v127
  %v363 = vpack.c.bf16 %v130, %v129
  %v364 = vpack.c.bf16 %v341, %v340
  %v365 = vpack.c.bf16 %v343, %v342
  %v366 = vpack.c.bf16 %v345, %v344
  %v367 = vpack.c.bf16 %v347, %v346
  %v368 = vpack.c.bf16 %v349, %v348
  %v369 = vpack.c.bf16 %v351, %v350
  %v370 = vpack.c.bf16 %v353, %v352
  %v371 = vpack.c.bf16 %v355, %v354
  %372 = vmatprep.subr.bf16.mxu0 0
  %373 = vmatpush1.bf16.msra.mxu0 %v356
  %374 = vmatprep.subr.bf16.mxu0 0
  %375 = vmatpush1.bf16.msra.mxu0 %v357
  %376 = vmatprep.subr.bf16.mxu0 0
  %377 = vmatpush1.bf16.msra.mxu0 %v358
  %378 = vmatprep.subr.bf16.mxu0 0
  %379 = vmatpush1.bf16.msra.mxu0 %v359
  %380 = vmatprep.subr.bf16.mxu0 0
  %381 = vmatpush1.bf16.msra.mxu0 %v360
  %382 = vmatprep.subr.bf16.mxu0 0
  %383 = vmatpush1.bf16.msra.mxu0 %v361
  %384 = vmatprep.subr.bf16.mxu0 0
  %385 = vmatpush1.bf16.msra.mxu0 %v362
  %386 = vmatprep.subr.bf16.mxu0 0
  %387 = vmatpush1.bf16.msra.mxu0 %v363
  %388 = vmatprep.subr.bf16.mxu0 0
  %389 = vmatpush1.bf16.msra.mxu0 0
  %390 = vmatprep.subr.bf16.mxu0 0
  %391 = vmatpush1.bf16.msra.mxu0 0
  %392 = vmatprep.subr.bf16.mxu0 0
  %393 = vmatpush1.bf16.msra.mxu0 0
  %394 = vmatprep.subr.bf16.mxu0 0
  %395 = vmatpush1.bf16.msra.mxu0 0
  %396 = vmatprep.subr.bf16.mxu0 0
  %397 = vmatpush1.bf16.msra.mxu0 0
  %398 = vmatprep.subr.bf16.mxu0 0
  %399 = vmatpush1.bf16.msra.mxu0 0
  %400 = vmatprep.subr.bf16.mxu0 0
  %401 = vmatpush1.bf16.msra.mxu0 0
  %402 = vmatprep.subr.bf16.mxu0 0
  %403 = vmatpush1.bf16.msra.mxu0 0
  %404 = vmatprep.mubr.bf16.mxu0 0
  %405 = vmatmul.mubr.bf16.gmra.mrb[0].mxu0 0
  %v406 = vpop.f32.mrb[0].mxu0
  %v407 = vadd.f32 0.0, %v406
  %v408 = vpop.f32.mrb[0].mxu0
  %v409 = vpop.f32.mrb[0].mxu0
  %v410 = vpop.f32.mrb[0].mxu0
  %411 = vdwg.mxu0
  %v412 = vadd.f32 %v112, %v407
  %v413 = vmul.f32 %v29, 0.0
  %v414 = vtanh.pop %v412
  %v415 = vmul.f32 %v28, %v414
  %v416 = vadd.f32 %v413, %v415
  %417 = vst [vmem:[#allocation2] sm:$0x1] %v416
  %v418 = vpack.c.bf16 %v416, %v416
  %419 = vmatprep.subr.bf16.mxu0 0
  %420 = vmatpush1.bf16.msra.mxu0 %v356
  %421 = vmatprep.subr.bf16.mxu0 0
  %422 = vmatpush1.bf16.msra.mxu0 %v357
  %423 = vmatprep.subr.bf16.mxu0 0
  %424 = vmatpush1.bf16.msra.mxu0 %v358
  %425 = vmatprep.subr.bf16.mxu0 0
  %426 = vmatpush1.bf16.msra.mxu0 %v359
  %427 = vmatprep.subr.bf16.mxu0 0
  %428 = vmatpush1.bf16.msra.mxu0 %v360
  %429 = vmatprep.subr.bf16.mxu0 0
  %430 = vmatpush1.bf16.msra.mxu0 %v361
  %431 = vmatprep.subr.bf16.mxu0 0
  %432 = vmatpush1.bf16.msra.mxu0 %v362
  %433 = vmatprep.subr.bf16.mxu0 0
  %434 = vmatpush1.bf16.msra.mxu0 %v363
  %435 = vmatprep.subr.bf16.mxu0 0
  %436 = vmatpush1.bf16.msra.mxu0 0
  %437 = vmatprep.subr.bf16.mxu0 0
  %438 = vmatpush1.bf16.msra.mxu0 0
  %439 = vmatprep.subr.bf16.mxu0 0
  %440 = vmatpush1.bf16.msra.mxu0 0
  %441 = vmatprep.subr.bf16.mxu0 0
  %442 = vmatpush1.bf16.msra.mxu0 0
  %443 = vmatprep.subr.bf16.mxu0 0
  %444 = vmatpush1.bf16.msra.mxu0 0
  %445 = vmatprep.subr.bf16.mxu0 0
  %446 = vmatpush1.bf16.msra.mxu0 0
  %447 = vmatprep.subr.bf16.mxu0 0
  %448 = vmatpush1.bf16.msra.mxu0 0
  %449 = vmatprep.subr.bf16.mxu0 0
  %450 = vmatpush1.bf16.msra.mxu0 0
  %451 = vmatprep.mubr.bf16.mxu0 0
  %452 = vmatmul.mubr.bf16.gmra.mrb[0].mxu0 %v418
  %v453 = vpop.f32.mrb[0].mxu0
  %v454 = vadd.f32 0.0, %v453
  %v455 = vpop.f32.mrb[0].mxu0
  %v456 = vpop.f32.mrb[0].mxu0
  %v457 = vpop.f32.mrb[0].mxu0
  %458 = vdwg.mxu0
  %v460 = vrot.slane %v454, 7
  %v462 = vadd.f32 %v112, %v460
  %v463 = vmul.f32 %v29, %v416
  %v464 = vtanh.pop %v462
  %v465 = vmul.f32 %v28, %v464
  %v467 = vrot.slane %v465, 1
  %v469 = vadd.f32 %v463, %v467
  %470 = vst [vmem:[#allocation2 + $0x1] sm:$0x1] %v469
  %v471 = vpack.c.bf16 %v469, %v469
  %472 = vmatprep.subr.bf16.mxu0 0
  %473 = vmatpush1.bf16.msra.mxu0 %v356
  %474 = vmatprep.subr.bf16.mxu0 0
  %475 = vmatpush1.bf16.msra.mxu0 %v357
  %476 = vmatprep.subr.bf16.mxu0 0
  %477 = vmatpush1.bf16.msra.mxu0 %v358
  %478 = vmatprep.subr.bf16.mxu0 0
  %479 = vmatpush1.bf16.msra.mxu0 %v359
  %480 = vmatprep.subr.bf16.mxu0 0
  %481 = vmatpush1.bf16.msra.mxu0 %v360
  %482 = vmatprep.subr.bf16.mxu0 0
  %483 = vmatpush1.bf16.msra.mxu0 %v361
  %484 = vmatprep.subr.bf16.mxu0 0
  %485 = vmatpush1.bf16.msra.mxu0 %v362
  %486 = vmatprep.subr.bf16.mxu0 0
  %487 = vmatpush1.bf16.msra.mxu0 %v363
  %488 = vmatprep.subr.bf16.mxu0 0
  %489 = vmatpush1.bf16.msra.mxu0 0
  %490 = vmatprep.subr.bf16.mxu0 0
  %491 = vmatpush1.bf16.msra.mxu0 0
  %492 = vmatprep.subr.bf16.mxu0 0
  %493 = vmatpush1.bf16.msra.mxu0 0
  %494 = vmatprep.subr.bf16.mxu0 0
  %495 = vmatpush1.bf16.msra.mxu0 0
  %496 = vmatprep.subr.bf16.mxu0 0
  %497 = vmatpush1.bf16.msra.mxu0 0
  %498 = vmatprep.subr.bf16.mxu0 0
  %499 = vmatpush1.bf16.msra.mxu0 0
  %500 = vmatprep.subr.bf16.mxu0 0
  %501 = vmatpush1.bf16.msra.mxu0 0
  %502 = vmatprep.subr.bf16.mxu0 0
  %503 = vmatpush1.bf16.msra.mxu0 0
  %504 = vmatprep.mubr.bf16.mxu0 0
  %505 = vmatmul.mubr.bf16.gmra.mrb[0].mxu0 %v471
  %v506 = vpop.f32.mrb[0].mxu0
  %v507 = vadd.f32 0.0, %v506
  %v508 = vpop.f32.mrb[0].mxu0
  %v509 = vpop.f32.mrb[0].mxu0
  %v510 = vpop.f32.mrb[0].mxu0
  %511 = vdwg.mxu0
  %v513 = vrot.slane %v507, 6
  %v515 = vadd.f32 %v112, %v513
  %v516 = vmul.f32 %v29, %v469
  %v517 = vtanh.pop %v515
  %v518 = vmul.f32 %v28, %v517
  %v520 = vrot.slane %v518, 2
  %v522 = vadd.f32 %v516, %v520
  %523 = vst [vmem:[#allocation2 + $0x2] sm:$0x1] %v522
  %v524 = vpack.c.bf16 %v522, %v522
  %525 = vmatprep.subr.bf16.mxu0 0
  %526 = vmatpush1.bf16.msra.mxu0 %v356
  %527 = vmatprep.subr.bf16.mxu0 0
  %528 = vmatpush1.bf16.msra.mxu0 %v357
  %529 = vmatprep.subr.bf16.mxu0 0
  %530 = vmatpush1.bf16.msra.mxu0 %v358
  %531 = vmatprep.subr.bf16.mxu0 0
  %532 = vmatpush1.bf16.msra.mxu0 %v359
  %533 = vmatprep.subr.bf16.mxu0 0
  %534 = vmatpush1.bf16.msra.mxu0 %v360
  %535 = vmatprep.subr.bf16.mxu0 0
  %536 = vmatpush1.bf16.msra.mxu0 %v361
  %537 = vmatprep.subr.bf16.mxu0 0
  %538 = vmatpush1.bf16.msra.mxu0 %v362
  %539 = vmatprep.subr.bf16.mxu0 0
  %540 = vmatpush1.bf16.msra.mxu0 %v363
  %541 = vmatprep.subr.bf16.mxu0 0
  %542 = vmatpush1.bf16.msra.mxu0 0
  %543 = vmatprep.subr.bf16.mxu0 0
  %544 = vmatpush1.bf16.msra.mxu0 0
  %545 = vmatprep.subr.bf16.mxu0 0
  %546 = vmatpush1.bf16.msra.mxu0 0
  %547 = vmatprep.subr.bf16.mxu0 0
  %548 = vmatpush1.bf16.msra.mxu0 0
  %549 = vmatprep.subr.bf16.mxu0 0
  %550 = vmatpush1.bf16.msra.mxu0 0
  %551 = vmatprep.subr.bf16.mxu0 0
  %552 = vmatpush1.bf16.msra.mxu0 0
  %553 = vmatprep.subr.bf16.mxu0 0
  %554 = vmatpush1.bf16.msra.mxu0 0
  %555 = vmatprep.subr.bf16.mxu0 0
  %556 = vmatpush1.bf16.msra.mxu0 0
  %557 = vmatprep.mubr.bf16.mxu0 0
  %558 = vmatmul.mubr.bf16.gmra.mrb[0].mxu0 %v524
  %v559 = vpop.f32.mrb[0].mxu0
  %v560 = vadd.f32 0.0, %v559
  %v561 = vpop.f32.mrb[0].mxu0
  %v562 = vpop.f32.mrb[0].mxu0
  %v563 = vpop.f32.mrb[0].mxu0
  %564 = vdwg.mxu0
  %v566 = vrot.slane %v560, 5
  %v568 = vadd.f32 %v112, %v566
  %v569 = vmul.f32 %v29, %v522
  %v570 = vtanh.pop %v568
  %v571 = vmul.f32 %v28, %v570
  %v573 = vrot.slane %v571, 3
  %v575 = vadd.f32 %v569, %v573
  %576 = vst [vmem:[#allocation2 + $0x3] sm:$0x1] %v575
  %v577 = vpack.c.bf16 %v575, %v575
  %578 = vmatprep.subr.bf16.mxu0 0
  %579 = vmatpush1.bf16.msra.mxu0 %v356
  %580 = vmatprep.subr.bf16.mxu0 0
  %581 = vmatpush1.bf16.msra.mxu0 %v357
  %582 = vmatprep.subr.bf16.mxu0 0
  %583 = vmatpush1.bf16.msra.mxu0 %v358
  %584 = vmatprep.subr.bf16.mxu0 0
  %585 = vmatpush1.bf16.msra.mxu0 %v359
  %586 = vmatprep.subr.bf16.mxu0 0
  %587 = vmatpush1.bf16.msra.mxu0 %v360
  %588 = vmatprep.subr.bf16.mxu0 0
  %589 = vmatpush1.bf16.msra.mxu0 %v361
  %590 = vmatprep.subr.bf16.mxu0 0
  %591 = vmatpush1.bf16.msra.mxu0 %v362
  %592 = vmatprep.subr.bf16.mxu0 0
  %593 = vmatpush1.bf16.msra.mxu0 %v363
  %594 = vmatprep.subr.bf16.mxu0 0
  %595 = vmatpush1.bf16.msra.mxu0 0
  %596 = vmatprep.subr.bf16.mxu0 0
  %597 = vmatpush1.bf16.msra.mxu0 0
  %598 = vmatprep.subr.bf16.mxu0 0
  %599 = vmatpush1.bf16.msra.mxu0 0
  %600 = vmatprep.subr.bf16.mxu0 0
  %601 = vmatpush1.bf16.msra.mxu0 0
  %602 = vmatprep.subr.bf16.mxu0 0
  %603 = vmatpush1.bf16.msra.mxu0 0
  %604 = vmatprep.subr.bf16.mxu0 0
  %605 = vmatpush1.bf16.msra.mxu0 0
  %606 = vmatprep.subr.bf16.mxu0 0
  %607 = vmatpush1.bf16.msra.mxu0 0
  %608 = vmatprep.subr.bf16.mxu0 0
  %609 = vmatpush1.bf16.msra.mxu0 0
  %610 = vmatprep.mubr.bf16.mxu0 0
  %611 = vmatmul.mubr.bf16.gmra.mrb[0].mxu0 %v577
  %v612 = vpop.f32.mrb[0].mxu0
  %v613 = vadd.f32 0.0, %v612
  %v614 = vpop.f32.mrb[0].mxu0
  %v615 = vpop.f32.mrb[0].mxu0
  %v616 = vpop.f32.mrb[0].mxu0
  %617 = vdwg.mxu0
  %v619 = vrot.slane %v613, 4
  %v621 = vadd.f32 %v112, %v619
  %v622 = vmul.f32 %v29, %v575
  %v623 = vtanh.pop %v621
  %v624 = vmul.f32 %v28, %v623
  %v626 = vrot.slane %v624, 4
  %v628 = vadd.f32 %v622, %v626
  %629 = vst [vmem:[#allocation2 + $0x4] sm:$0x1] %v628
  %v630 = vpack.c.bf16 %v628, %v628
  %631 = vmatprep.subr.bf16.mxu0 0
  %632 = vmatpush1.bf16.msra.mxu0 %v356
  %633 = vmatprep.subr.bf16.mxu0 0
  %634 = vmatpush1.bf16.msra.mxu0 %v357
  %635 = vmatprep.subr.bf16.mxu0 0
  %636 = vmatpush1.bf16.msra.mxu0 %v358
  %637 = vmatprep.subr.bf16.mxu0 0
  %638 = vmatpush1.bf16.msra.mxu0 %v359
  %639 = vmatprep.subr.bf16.mxu0 0
  %640 = vmatpush1.bf16.msra.mxu0 %v360
  %641 = vmatprep.subr.bf16.mxu0 0
  %642 = vmatpush1.bf16.msra.mxu0 %v361
  %643 = vmatprep.subr.bf16.mxu0 0
  %644 = vmatpush1.bf16.msra.mxu0 %v362
  %645 = vmatprep.subr.bf16.mxu0 0
  %646 = vmatpush1.bf16.msra.mxu0 %v363
  %647 = vmatprep.subr.bf16.mxu0 0
  %648 = vmatpush1.bf16.msra.mxu0 0
  %649 = vmatprep.subr.bf16.mxu0 0
  %650 = vmatpush1.bf16.msra.mxu0 0
  %651 = vmatprep.subr.bf16.mxu0 0
  %652 = vmatpush1.bf16.msra.mxu0 0
  %653 = vmatprep.subr.bf16.mxu0 0
  %654 = vmatpush1.bf16.msra.mxu0 0
  %655 = vmatprep.subr.bf16.mxu0 0
  %656 = vmatpush1.bf16.msra.mxu0 0
  %657 = vmatprep.subr.bf16.mxu0 0
  %658 = vmatpush1.bf16.msra.mxu0 0
  %659 = vmatprep.subr.bf16.mxu0 0
  %660 = vmatpush1.bf16.msra.mxu0 0
  %661 = vmatprep.subr.bf16.mxu0 0
  %662 = vmatpush1.bf16.msra.mxu0 0
  %663 = vmatprep.mubr.bf16.mxu0 0
  %664 = vmatmul.mubr.bf16.gmra.mrb[0].mxu0 %v630
  %v665 = vpop.f32.mrb[0].mxu0
  %v666 = vadd.f32 0.0, %v665
  %v667 = vpop.f32.mrb[0].mxu0
  %v668 = vpop.f32.mrb[0].mxu0
  %v669 = vpop.f32.mrb[0].mxu0
  %670 = vdwg.mxu0
  %v672 = vrot.slane %v666, 3
  %v674 = vadd.f32 %v112, %v672
  %v675 = vmul.f32 %v29, %v628
  %v676 = vtanh.pop %v674
  %v677 = vmul.f32 %v28, %v676
  %v679 = vrot.slane %v677, 5
  %v681 = vadd.f32 %v675, %v679
  %682 = vst [vmem:[#allocation2 + $0x5] sm:$0x1] %v681
  %v683 = vpack.c.bf16 %v681, %v681
  %684 = vmatprep.subr.bf16.mxu0 0
  %685 = vmatpush1.bf16.msra.mxu0 %v356
  %686 = vmatprep.subr.bf16.mxu0 0
  %687 = vmatpush1.bf16.msra.mxu0 %v357
  %688 = vmatprep.subr.bf16.mxu0 0
  %689 = vmatpush1.bf16.msra.mxu0 %v358
  %690 = vmatprep.subr.bf16.mxu0 0
  %691 = vmatpush1.bf16.msra.mxu0 %v359
  %692 = vmatprep.subr.bf16.mxu0 0
  %693 = vmatpush1.bf16.msra.mxu0 %v360
  %694 = vmatprep.subr.bf16.mxu0 0
  %695 = vmatpush1.bf16.msra.mxu0 %v361
  %696 = vmatprep.subr.bf16.mxu0 0
  %697 = vmatpush1.bf16.msra.mxu0 %v362
  %698 = vmatprep.subr.bf16.mxu0 0
  %699 = vmatpush1.bf16.msra.mxu0 %v363
  %700 = vmatprep.subr.bf16.mxu0 0
  %701 = vmatpush1.bf16.msra.mxu0 0
  %702 = vmatprep.subr.bf16.mxu0 0
  %703 = vmatpush1.bf16.msra.mxu0 0
  %704 = vmatprep.subr.bf16.mxu0 0
  %705 = vmatpush1.bf16.msra.mxu0 0
  %706 = vmatprep.subr.bf16.mxu0 0
  %707 = vmatpush1.bf16.msra.mxu0 0
  %708 = vmatprep.subr.bf16.mxu0 0
  %709 = vmatpush1.bf16.msra.mxu0 0
  %710 = vmatprep.subr.bf16.mxu0 0
  %711 = vmatpush1.bf16.msra.mxu0 0
  %712 = vmatprep.subr.bf16.mxu0 0
  %713 = vmatpush1.bf16.msra.mxu0 0
  %714 = vmatprep.subr.bf16.mxu0 0
  %715 = vmatpush1.bf16.msra.mxu0 0
  %716 = vmatprep.mubr.bf16.mxu0 0
  %717 = vmatmul.mubr.bf16.gmra.mrb[0].mxu0 %v683
  %v718 = vpop.f32.mrb[0].mxu0
  %v719 = vadd.f32 0.0, %v718
  %v720 = vpop.f32.mrb[0].mxu0
  %v721 = vpop.f32.mrb[0].mxu0
  %v722 = vpop.f32.mrb[0].mxu0
  %723 = vdwg.mxu0
  %v725 = vrot.slane %v719, 2
  %v727 = vadd.f32 %v112, %v725
  %v728 = vmul.f32 %v29, %v681
  %v729 = vtanh.pop %v727
  %v730 = vmul.f32 %v28, %v729
  %v732 = vrot.slane %v730, 6
  %v734 = vadd.f32 %v728, %v732
  %735 = vst [vmem:[#allocation2 + $0x6] sm:$0x1] %v734
  %v736 = vpack.c.bf16 %v734, %v734
  %737 = vmatprep.subr.bf16.mxu0 0
  %738 = vmatpush1.bf16.msra.mxu0 %v356
  %739 = vmatprep.subr.bf16.mxu0 0
  %740 = vmatpush1.bf16.msra.mxu0 %v357
  %741 = vmatprep.subr.bf16.mxu0 0
  %742 = vmatpush1.bf16.msra.mxu0 %v358
  %743 = vmatprep.subr.bf16.mxu0 0
  %744 = vmatpush1.bf16.msra.mxu0 %v359
  %745 = vmatprep.subr.bf16.mxu0 0
  %746 = vmatpush1.bf16.msra.mxu0 %v360
  %747 = vmatprep.subr.bf16.mxu0 0
  %748 = vmatpush1.bf16.msra.mxu0 %v361
  %749 = vmatprep.subr.bf16.mxu0 0
  %750 = vmatpush1.bf16.msra.mxu0 %v362
  %751 = vmatprep.subr.bf16.mxu0 0
  %752 = vmatpush1.bf16.msra.mxu0 %v363
  %753 = vmatprep.subr.bf16.mxu0 0
  %754 = vmatpush1.bf16.msra.mxu0 0
  %755 = vmatprep.subr.bf16.mxu0 0
  %756 = vmatpush1.bf16.msra.mxu0 0
  %757 = vmatprep.subr.bf16.mxu0 0
  %758 = vmatpush1.bf16.msra.mxu0 0
  %759 = vmatprep.subr.bf16.mxu0 0
  %760 = vmatpush1.bf16.msra.mxu0 0
  %761 = vmatprep.subr.bf16.mxu0 0
  %762 = vmatpush1.bf16.msra.mxu0 0
  %763 = vmatprep.subr.bf16.mxu0 0
  %764 = vmatpush1.bf16.msra.mxu0 0
  %765 = vmatprep.subr.bf16.mxu0 0
  %766 = vmatpush1.bf16.msra.mxu0 0
  %767 = vmatprep.subr.bf16.mxu0 0
  %768 = vmatpush1.bf16.msra.mxu0 0
  %769 = vmatprep.mubr.bf16.mxu0 0
  %770 = vmatmul.mubr.bf16.gmra.mrb[0].mxu0 %v736
  %v771 = vpop.f32.mrb[0].mxu0
  %v772 = vadd.f32 0.0, %v771
  %v773 = vpop.f32.mrb[0].mxu0
  %v774 = vpop.f32.mrb[0].mxu0
  %v775 = vpop.f32.mrb[0].mxu0
  %776 = vdwg.mxu0
  %v778 = vrot.slane %v772, 1
  %v780 = vadd.f32 %v112, %v778
  %v781 = vmul.f32 %v29, %v734
  %v782 = vtanh.pop %v780
  %v783 = vmul.f32 %v28, %v782
  %v785 = vrot.slane %v783, 7
  %v787 = vadd.f32 %v781, %v785
  %788 = vst [vmem:[#allocation2 + $0x7] sm:$0x1] %v787
  %v789 = vpack.c.bf16 %v787, %v787
  %790 = vmatprep.subr.bf16.mxu0 0
  %791 = vmatpush1.bf16.msra.mxu0 %v364
  %792 = vmatprep.subr.bf16.mxu0 0
  %793 = vmatpush1.bf16.msra.mxu0 %v365
  %794 = vmatprep.subr.bf16.mxu0 0
  %795 = vmatpush1.bf16.msra.mxu0 %v366
  %796 = vmatprep.subr.bf16.mxu0 0
  %797 = vmatpush1.bf16.msra.mxu0 %v367
  %798 = vmatprep.subr.bf16.mxu0 0
  %799 = vmatpush1.bf16.msra.mxu0 %v368
  %800 = vmatprep.subr.bf16.mxu0 0
  %801 = vmatpush1.bf16.msra.mxu0 %v369
  %802 = vmatprep.subr.bf16.mxu0 0
  %803 = vmatpush1.bf16.msra.mxu0 %v370
  %804 = vmatprep.subr.bf16.mxu0 0
  %805 = vmatpush1.bf16.msra.mxu0 %v371
  %806 = vmatprep.subr.bf16.mxu0 0
  %807 = vmatpush1.bf16.msra.mxu0 0
  %808 = vmatprep.subr.bf16.mxu0 0
  %809 = vmatpush1.bf16.msra.mxu0 0
  %810 = vmatprep.subr.bf16.mxu0 0
  %811 = vmatpush1.bf16.msra.mxu0 0
  %812 = vmatprep.subr.bf16.mxu0 0
  %813 = vmatpush1.bf16.msra.mxu0 0
  %814 = vmatprep.subr.bf16.mxu0 0
  %815 = vmatpush1.bf16.msra.mxu0 0
  %816 = vmatprep.subr.bf16.mxu0 0
  %817 = vmatpush1.bf16.msra.mxu0 0
  %818 = vmatprep.subr.bf16.mxu0 0
  %819 = vmatpush1.bf16.msra.mxu0 0
  %820 = vmatprep.subr.bf16.mxu0 0
  %821 = vmatpush1.bf16.msra.mxu0 0
  %822 = vmatprep.mubr.bf16.mxu0 0
  %823 = vmatmul.mubr.bf16.gmra.mrb[0].mxu0 %v789
  %v824 = vpop.f32.mrb[0].mxu0
  %v825 = vadd.f32 %v25, %v824
  %v826 = vpop.f32.mrb[0].mxu0
  %v827 = vpop.f32.mrb[0].mxu0
  %v828 = vpop.f32.mrb[0].mxu0
  %829 = vdwg.mxu0
  %v830 = vmul.f32 %v29, %v787
  %v831 = vtanh.pop %v825
  %v832 = vmul.f32 %v28, %v831
  %v833 = vadd.f32 %v830, %v832
  %834 = vst [vmem:[#allocation2 + $0x8] sm:$0x1] %v833
  %v835 = vpack.c.bf16 %v833, %v833
  %836 = vmatprep.subr.bf16.mxu0 0
  %837 = vmatpush1.bf16.msra.mxu0 %v364
  %838 = vmatprep.subr.bf16.mxu0 0
  %839 = vmatpush1.bf16.msra.mxu0 %v365
  %840 = vmatprep.subr.bf16.mxu0 0
  %841 = vmatpush1.bf16.msra.mxu0 %v366
  %842 = vmatprep.subr.bf16.mxu0 0
  %843 = vmatpush1.bf16.msra.mxu0 %v367
  %844 = vmatprep.subr.bf16.mxu0 0
  %845 = vmatpush1.bf16.msra.mxu0 %v368
  %846 = vmatprep.subr.bf16.mxu0 0
  %847 = vmatpush1.bf16.msra.mxu0 %v369
  %848 = vmatprep.subr.bf16.mxu0 0
  %849 = vmatpush1.bf16.msra.mxu0 %v370
  %850 = vmatprep.subr.bf16.mxu0 0
  %851 = vmatpush1.bf16.msra.mxu0 %v371
  %852 = vmatprep.subr.bf16.mxu0 0
  %853 = vmatpush1.bf16.msra.mxu0 0
  %854 = vmatprep.subr.bf16.mxu0 0
  %855 = vmatpush1.bf16.msra.mxu0 0
  %856 = vmatprep.subr.bf16.mxu0 0
  %857 = vmatpush1.bf16.msra.mxu0 0
  %858 = vmatprep.subr.bf16.mxu0 0
  %859 = vmatpush1.bf16.msra.mxu0 0
  %860 = vmatprep.subr.bf16.mxu0 0
  %861 = vmatpush1.bf16.msra.mxu0 0
  %862 = vmatprep.subr.bf16.mxu0 0
  %863 = vmatpush1.bf16.msra.mxu0 0
  %864 = vmatprep.subr.bf16.mxu0 0
  %865 = vmatpush1.bf16.msra.mxu0 0
  %866 = vmatprep.subr.bf16.mxu0 0
  %867 = vmatpush1.bf16.msra.mxu0 0
  %868 = vmatprep.mubr.bf16.mxu0 0
  %869 = vmatmul.mubr.bf16.gmra.mrb[0].mxu0 %v835
  %v870 = vpop.f32.mrb[0].mxu0
  %v871 = vadd.f32 %v25, %v870
  %v872 = vpop.f32.mrb[0].mxu0
  %v873 = vpop.f32.mrb[0].mxu0
  %v874 = vpop.f32.mrb[0].mxu0
  %875 = vdwg.mxu0
  %v876 = vmul.f32 %v29, %v833
  %v877 = vtanh.pop %v871
  %v878 = vmul.f32 %v28, %v877
  %v879 = vadd.f32 %v876, %v878
  %880 = vst [vmem:[#allocation2 + $0x9] sm:$0x1] %v879
  %v881 = vpack.c.bf16 %v879, %v879
  %882 = vmatprep.subr.bf16.mxu0 0
  %883 = vmatpush1.bf16.msra.mxu0 %v364
  %884 = vmatprep.subr.bf16.mxu0 0
  %885 = vmatpush1.bf16.msra.mxu0 %v365
  %886 = vmatprep.subr.bf16.mxu0 0
  %887 = vmatpush1.bf16.msra.mxu0 %v366
  %888 = vmatprep.subr.bf16.mxu0 0
  %889 = vmatpush1.bf16.msra.mxu0 %v367
  %890 = vmatprep.subr.bf16.mxu0 0
  %891 = vmatpush1.bf16.msra.mxu0 %v368
  %892 = vmatprep.subr.bf16.mxu0 0
  %893 = vmatpush1.bf16.msra.mxu0 %v369
  %894 = vmatprep.subr.bf16.mxu0 0
  %895 = vmatpush1.bf16.msra.mxu0 %v370
  %896 = vmatprep.subr.bf16.mxu0 0
  %897 = vmatpush1.bf16.msra.mxu0 %v371
  %898 = vmatprep.subr.bf16.mxu0 0
  %899 = vmatpush1.bf16.msra.mxu0 0
  %900 = vmatprep.subr.bf16.mxu0 0
  %901 = vmatpush1.bf16.msra.mxu0 0
  %902 = vmatprep.subr.bf16.mxu0 0
  %903 = vmatpush1.bf16.msra.mxu0 0
  %904 = vmatprep.subr.bf16.mxu0 0
  %905 = vmatpush1.bf16.msra.mxu0 0
  %906 = vmatprep.subr.bf16.mxu0 0
  %907 = vmatpush1.bf16.msra.mxu0 0
  %908 = vmatprep.subr.bf16.mxu0 0
  %909 = vmatpush1.bf16.msra.mxu0 0
  %910 = vmatprep.subr.bf16.mxu0 0
  %911 = vmatpush1.bf16.msra.mxu0 0
  %912 = vmatprep.subr.bf16.mxu0 0
  %913 = vmatpush1.bf16.msra.mxu0 0
  %914 = vmatprep.mubr.bf16.mxu0 0
  %915 = vmatmul.mubr.bf16.gmra.mrb[0].mxu0 %v881
  %v916 = vpop.f32.mrb[0].mxu0
  %v917 = vadd.f32 %v25, %v916
  %v918 = vpop.f32.mrb[0].mxu0
  %v919 = vpop.f32.mrb[0].mxu0
  %v920 = vpop.f32.mrb[0].mxu0
  %921 = vdwg.mxu0
  %v922 = vmul.f32 %v29, %v879
  %v923 = vtanh.pop %v917
  %v924 = vmul.f32 %v28, %v923
  %v925 = vadd.f32 %v922, %v924
  %926 = vst [vmem:[#allocation2 + $0xa] sm:$0x1] %v925
  %v927 = vpack.c.bf16 %v925, %v925
  %928 = vmatprep.subr.bf16.mxu0 0
  %929 = vmatpush1.bf16.msra.mxu0 %v364
  %930 = vmatprep.subr.bf16.mxu0 0
  %931 = vmatpush1.bf16.msra.mxu0 %v365
  %932 = vmatprep.subr.bf16.mxu0 0
  %933 = vmatpush1.bf16.msra.mxu0 %v366
  %934 = vmatprep.subr.bf16.mxu0 0
  %935 = vmatpush1.bf16.msra.mxu0 %v367
  %936 = vmatprep.subr.bf16.mxu0 0
  %937 = vmatpush1.bf16.msra.mxu0 %v368
  %938 = vmatprep.subr.bf16.mxu0 0
  %939 = vmatpush1.bf16.msra.mxu0 %v369
  %940 = vmatprep.subr.bf16.mxu0 0
  %941 = vmatpush1.bf16.msra.mxu0 %v370
  %942 = vmatprep.subr.bf16.mxu0 0
  %943 = vmatpush1.bf16.msra.mxu0 %v371
  %944 = vmatprep.subr.bf16.mxu0 0
  %945 = vmatpush1.bf16.msra.mxu0 0
  %946 = vmatprep.subr.bf16.mxu0 0
  %947 = vmatpush1.bf16.msra.mxu0 0
  %948 = vmatprep.subr.bf16.mxu0 0
  %949 = vmatpush1.bf16.msra.mxu0 0
  %950 = vmatprep.subr.bf16.mxu0 0
  %951 = vmatpush1.bf16.msra.mxu0 0
  %952 = vmatprep.subr.bf16.mxu0 0
  %953 = vmatpush1.bf16.msra.mxu0 0
  %954 = vmatprep.subr.bf16.mxu0 0
  %955 = vmatpush1.bf16.msra.mxu0 0
  %956 = vmatprep.subr.bf16.mxu0 0
  %957 = vmatpush1.bf16.msra.mxu0 0
  %958 = vmatprep.subr.bf16.mxu0 0
  %959 = vmatpush1.bf16.msra.mxu0 0
  %960 = vmatprep.mubr.bf16.mxu0 0
  %961 = vmatmul.mubr.bf16.gmra.mrb[0].mxu0 %v927
  %v962 = vpop.f32.mrb[0].mxu0
  %v963 = vadd.f32 %v25, %v962
  %v964 = vpop.f32.mrb[0].mxu0
  %v965 = vpop.f32.mrb[0].mxu0
  %v966 = vpop.f32.mrb[0].mxu0
  %967 = vdwg.mxu0
  %v968 = vmul.f32 %v29, %v925
  %v969 = vtanh.pop %v963
  %v970 = vmul.f32 %v28, %v969
  %v971 = vadd.f32 %v968, %v970
  %972 = vst [vmem:[#allocation2 + $0xb] sm:$0x1] %v971
  %v973 = vpack.c.bf16 %v971, %v971
  %974 = vmatprep.subr.bf16.mxu0 0
  %975 = vmatpush1.bf16.msra.mxu0 %v364
  %976 = vmatprep.subr.bf16.mxu0 0
  %977 = vmatpush1.bf16.msra.mxu0 %v365
  %978 = vmatprep.subr.bf16.mxu0 0
  %979 = vmatpush1.bf16.msra.mxu0 %v366
  %980 = vmatprep.subr.bf16.mxu0 0
  %981 = vmatpush1.bf16.msra.mxu0 %v367
  %982 = vmatprep.subr.bf16.mxu0 0
  %983 = vmatpush1.bf16.msra.mxu0 %v368
  %984 = vmatprep.subr.bf16.mxu0 0
  %985 = vmatpush1.bf16.msra.mxu0 %v369
  %986 = vmatprep.subr.bf16.mxu0 0
  %987 = vmatpush1.bf16.msra.mxu0 %v370
  %988 = vmatprep.subr.bf16.mxu0 0
  %989 = vmatpush1.bf16.msra.mxu0 %v371
  %990 = vmatprep.subr.bf16.mxu0 0
  %991 = vmatpush1.bf16.msra.mxu0 0
  %992 = vmatprep.subr.bf16.mxu0 0
  %993 = vmatpush1.bf16.msra.mxu0 0
  %994 = vmatprep.subr.bf16.mxu0 0
  %995 = vmatpush1.bf16.msra.mxu0 0
  %996 = vmatprep.subr.bf16.mxu0 0
  %997 = vmatpush1.bf16.msra.mxu0 0
  %998 = vmatprep.subr.bf16.mxu0 0
  %999 = vmatpush1.bf16.msra.mxu0 0
  %1000 = vmatprep.subr.bf16.mxu0 0
  %1001 = vmatpush1.bf16.msra.mxu0 0
  %1002 = vmatprep.subr.bf16.mxu0 0
  %1003 = vmatpush1.bf16.msra.mxu0 0
  %1004 = vmatprep.subr.bf16.mxu0 0
  %1005 = vmatpush1.bf16.msra.mxu0 0
  %1006 = vmatprep.mubr.bf16.mxu0 0
  %1007 = vmatmul.mubr.bf16.gmra.mrb[0].mxu0 %v973
  %v1008 = vpop.f32.mrb[0].mxu0
  %v1009 = vadd.f32 %v25, %v1008
  %v1010 = vpop.f32.mrb[0].mxu0
  %v1011 = vpop.f32.mrb[0].mxu0
  %v1012 = vpop.f32.mrb[0].mxu0
  %1013 = vdwg.mxu0
  %v1014 = vmul.f32 %v29, %v971
  %v1015 = vtanh.pop %v1009
  %v1016 = vmul.f32 %v28, %v1015
  %v1017 = vadd.f32 %v1014, %v1016
  %1018 = vst [vmem:[#allocation2 + $0xc] sm:$0x1] %v1017
  %v1019 = vpack.c.bf16 %v1017, %v1017
  %1020 = vmatprep.subr.bf16.mxu0 0
  %1021 = vmatpush1.bf16.msra.mxu0 %v364
  %1022 = vmatprep.subr.bf16.mxu0 0
  %1023 = vmatpush1.bf16.msra.mxu0 %v365
  %1024 = vmatprep.subr.bf16.mxu0 0
  %1025 = vmatpush1.bf16.msra.mxu0 %v366
  %1026 = vmatprep.subr.bf16.mxu0 0
  %1027 = vmatpush1.bf16.msra.mxu0 %v367
  %1028 = vmatprep.subr.bf16.mxu0 0
  %1029 = vmatpush1.bf16.msra.mxu0 %v368
  %1030 = vmatprep.subr.bf16.mxu0 0
  %1031 = vmatpush1.bf16.msra.mxu0 %v369
  %1032 = vmatprep.subr.bf16.mxu0 0
  %1033 = vmatpush1.bf16.msra.mxu0 %v370
  %1034 = vmatprep.subr.bf16.mxu0 0
  %1035 = vmatpush1.bf16.msra.mxu0 %v371
  %1036 = vmatprep.subr.bf16.mxu0 0
  %1037 = vmatpush1.bf16.msra.mxu0 0
  %1038 = vmatprep.subr.bf16.mxu0 0
  %1039 = vmatpush1.bf16.msra.mxu0 0
  %1040 = vmatprep.subr.bf16.mxu0 0
  %1041 = vmatpush1.bf16.msra.mxu0 0
  %1042 = vmatprep.subr.bf16.mxu0 0
  %1043 = vmatpush1.bf16.msra.mxu0 0
  %1044 = vmatprep.subr.bf16.mxu0 0
  %1045 = vmatpush1.bf16.msra.mxu0 0
  %1046 = vmatprep.subr.bf16.mxu0 0
  %1047 = vmatpush1.bf16.msra.mxu0 0
  %1048 = vmatprep.subr.bf16.mxu0 0
  %1049 = vmatpush1.bf16.msra.mxu0 0
  %1050 = vmatprep.subr.bf16.mxu0 0
  %1051 = vmatpush1.bf16.msra.mxu0 0
  %1052 = vmatprep.mubr.bf16.mxu0 0
  %1053 = vmatmul.mubr.bf16.gmra.mrb[0].mxu0 %v1019
  %v1054 = vpop.f32.mrb[0].mxu0
  %v1055 = vadd.f32 %v25, %v1054
  %v1056 = vpop.f32.mrb[0].mxu0
  %v1057 = vpop.f32.mrb[0].mxu0
  %v1058 = vpop.f32.mrb[0].mxu0
  %1059 = vdwg.mxu0
  %v1060 = vmul.f32 %v29, %v1017
  %v1061 = vtanh.pop %v1055
  %v1062 = vmul.f32 %v28, %v1061
  %v1063 = vadd.f32 %v1060, %v1062
  %1064 = vst [vmem:[#allocation2 + $0xd] sm:$0x1] %v1063
  %v1065 = vpack.c.bf16 %v1063, %v1063
  %1066 = vmatprep.subr.bf16.mxu0 0
  %1067 = vmatpush1.bf16.msra.mxu0 %v364
  %1068 = vmatprep.subr.bf16.mxu0 0
  %1069 = vmatpush1.bf16.msra.mxu0 %v365
  %1070 = vmatprep.subr.bf16.mxu0 0
  %1071 = vmatpush1.bf16.msra.mxu0 %v366
  %1072 = vmatprep.subr.bf16.mxu0 0
  %1073 = vmatpush1.bf16.msra.mxu0 %v367
  %1074 = vmatprep.subr.bf16.mxu0 0
  %1075 = vmatpush1.bf16.msra.mxu0 %v368
  %1076 = vmatprep.subr.bf16.mxu0 0
  %1077 = vmatpush1.bf16.msra.mxu0 %v369
  %1078 = vmatprep.subr.bf16.mxu0 0
  %1079 = vmatpush1.bf16.msra.mxu0 %v370
  %1080 = vmatprep.subr.bf16.mxu0 0
  %1081 = vmatpush1.bf16.msra.mxu0 %v371
  %1082 = vmatprep.subr.bf16.mxu0 0
  %1083 = vmatpush1.bf16.msra.mxu0 0
  %1084 = vmatprep.subr.bf16.mxu0 0
  %1085 = vmatpush1.bf16.msra.mxu0 0
  %1086 = vmatprep.subr.bf16.mxu0 0
  %1087 = vmatpush1.bf16.msra.mxu0 0
  %1088 = vmatprep.subr.bf16.mxu0 0
  %1089 = vmatpush1.bf16.msra.mxu0 0
  %1090 = vmatprep.subr.bf16.mxu0 0
  %1091 = vmatpush1.bf16.msra.mxu0 0
  %1092 = vmatprep.subr.bf16.mxu0 0
  %1093 = vmatpush1.bf16.msra.mxu0 0
  %1094 = vmatprep.subr.bf16.mxu0 0
  %1095 = vmatpush1.bf16.msra.mxu0 0
  %1096 = vmatprep.subr.bf16.mxu0 0
  %1097 = vmatpush1.bf16.msra.mxu0 0
  %1098 = vmatprep.mubr.bf16.mxu0 0
  %1099 = vmatmul.mubr.bf16.gmra.mrb[0].mxu0 %v1065
  %v1100 = vpop.f32.mrb[0].mxu0
  %v1101 = vadd.f32 %v25, %v1100
  %v1102 = vpop.f32.mrb[0].mxu0
  %v1103 = vpop.f32.mrb[0].mxu0
  %v1104 = vpop.f32.mrb[0].mxu0
  %1105 = vdwg.mxu0
  %v1106 = vmul.f32 %v29, %v1063
  %v1107 = vtanh.pop %v1101
  %v1108 = vmul.f32 %v28, %v1107
  %v1109 = vadd.f32 %v1106, %v1108
  %1110 = vst [vmem:[#allocation2 + $0xe] sm:$0x1] %v1109
  %v1111 = vpack.c.bf16 %v1109, %v1109
  %1112 = vmatprep.subr.bf16.mxu0 0
  %1113 = vmatpush1.bf16.msra.mxu0 %v364
  %1114 = vmatprep.subr.bf16.mxu0 0
  %1115 = vmatpush1.bf16.msra.mxu0 %v365
  %1116 = vmatprep.subr.bf16.mxu0 0
  %1117 = vmatpush1.bf16.msra.mxu0 %v366
  %1118 = vmatprep.subr.bf16.mxu0 0
  %1119 = vmatpush1.bf16.msra.mxu0 %v367
  %1120 = vmatprep.subr.bf16.mxu0 0
  %1121 = vmatpush1.bf16.msra.mxu0 %v368
  %1122 = vmatprep.subr.bf16.mxu0 0
  %1123 = vmatpush1.bf16.msra.mxu0 %v369
  %1124 = vmatprep.subr.bf16.mxu0 0
  %1125 = vmatpush1.bf16.msra.mxu0 %v370
  %1126 = vmatprep.subr.bf16.mxu0 0
  %1127 = vmatpush1.bf16.msra.mxu0 %v371
  %1128 = vmatprep.subr.bf16.mxu0 0
  %1129 = vmatpush1.bf16.msra.mxu0 0
  %1130 = vmatprep.subr.bf16.mxu0 0
  %1131 = vmatpush1.bf16.msra.mxu0 0
  %1132 = vmatprep.subr.bf16.mxu0 0
  %1133 = vmatpush1.bf16.msra.mxu0 0
  %1134 = vmatprep.subr.bf16.mxu0 0
  %1135 = vmatpush1.bf16.msra.mxu0 0
  %1136 = vmatprep.subr.bf16.mxu0 0
  %1137 = vmatpush1.bf16.msra.mxu0 0
  %1138 = vmatprep.subr.bf16.mxu0 0
  %1139 = vmatpush1.bf16.msra.mxu0 0
  %1140 = vmatprep.subr.bf16.mxu0 0
  %1141 = vmatpush1.bf16.msra.mxu0 0
  %1142 = vmatprep.subr.bf16.mxu0 0
  %1143 = vmatpush1.bf16.msra.mxu0 0
  %1144 = vmatprep.mubr.bf16.mxu0 0
  %1145 = vmatmul.mubr.bf16.gmra.mrb[0].mxu0 %v1111
  %v1146 = vpop.f32.mrb[0].mxu0
  %v1147 = vadd.f32 %v25, %v1146
  %v1148 = vpop.f32.mrb[0].mxu0
  %v1149 = vpop.f32.mrb[0].mxu0
  %v1150 = vpop.f32.mrb[0].mxu0
  %1151 = vdwg.mxu0
  %v1152 = vmul.f32 %v29, %v1109
  %v1153 = vtanh.pop %v1147
  %v1154 = vmul.f32 %v28, %v1153
  %v1155 = vadd.f32 %v1152, %v1154
  %1156 = vst [vmem:[#allocation2 + $0xf] sm:$0x1] %v1155
  %v1157 = vld [vmem:[#allocation2] sm:$0xff]
  %v1158 = vld [vmem:[#allocation2 + $0x8] sm:$0xff]
  %v1159 = vld [vmem:[%s3] sm:$0xff]
  %v1160 = vld [vmem:[%s3 + $0x8] sm:$0xff]
  %v1161 = vld [vmem:[%s3 + $0x10] sm:$0xff]
  %v1162 = vld [vmem:[%s3 + $0x18] sm:$0xff]
  %v1163 = vld [vmem:[%s3 + $0x20] sm:$0xff]
  %v1164 = vld [vmem:[%s3 + $0x28] sm:$0xff]
  %v1165 = vld [vmem:[%s3 + $0x30] sm:$0xff]
  %v1166 = vld [vmem:[%s3 + $0x38] sm:$0xff]
  %v1167 = vld [vmem:[%s3 + $0x40] sm:$0xff]
  %v1168 = vld [vmem:[%s3 + $0x48] sm:$0xff]
  %v1169 = vld [vmem:[%s3 + $0x50] sm:$0xff]
  %v1170 = vld [vmem:[%s3 + $0x58] sm:$0xff]
  %v1171 = vld [vmem:[%s3 + $0x60] sm:$0xff]
  %v1172 = vld [vmem:[%s3 + $0x68] sm:$0xff]
  %v1173 = vld [vmem:[%s3 + $0x70] sm:$0xff]
  %v1174 = vld [vmem:[%s3 + $0x78] sm:$0xff]
  %1175 = vmatprep.subr.mxu0 0.0
  %1176 = vmatpush1.msra.mxu0 %v1159
  %1177 = vmatprep.subr.mxu0 0.0
  %1178 = vmatpush1.msra.mxu0 %v1160
  %1179 = vmatprep.subr.mxu0 0.0
  %1180 = vmatpush1.msra.mxu0 %v1161
  %1181 = vmatprep.subr.mxu0 0.0
  %1182 = vmatpush1.msra.mxu0 %v1162
  %1183 = vmatprep.subr.mxu0 0.0
  %1184 = vmatpush1.msra.mxu0 %v1163
  %1185 = vmatprep.subr.mxu0 0.0
  %1186 = vmatpush1.msra.mxu0 %v1164
  %1187 = vmatprep.subr.mxu0 0.0
  %1188 = vmatpush1.msra.mxu0 %v1165
  %1189 = vmatprep.subr.mxu0 0.0
  %1190 = vmatpush1.msra.mxu0 %v1166
  %1191 = vmatprep.subr.mxu0 0.0
  %1192 = vmatpush1.msra.mxu0 %v1167
  %1193 = vmatprep.subr.mxu0 0.0
  %1194 = vmatpush1.msra.mxu0 %v1168
  %1195 = vmatprep.subr.mxu0 0.0
  %1196 = vmatpush1.msra.mxu0 %v1169
  %1197 = vmatprep.subr.mxu0 0.0
  %1198 = vmatpush1.msra.mxu0 %v1170
  %1199 = vmatprep.subr.mxu0 0.0
  %1200 = vmatpush1.msra.mxu0 %v1171
  %1201 = vmatprep.subr.mxu0 0.0
  %1202 = vmatpush1.msra.mxu0 %v1172
  %1203 = vmatprep.subr.mxu0 0.0
  %1204 = vmatpush1.msra.mxu0 %v1173
  %1205 = vmatprep.subr.mxu0 0.0
  %1206 = vmatpush1.msra.mxu0 %v1174
  %1207 = vmatprep.subr.mxu0 0.0
  %1208 = vmatpush1.msra.mxu0 0.0
  %1209 = vmatprep.subr.mxu0 0.0
  %1210 = vmatpush1.msra.mxu0 0.0
  %1211 = vmatprep.subr.mxu0 0.0
  %1212 = vmatpush1.msra.mxu0 0.0
  %1213 = vmatprep.subr.mxu0 0.0
  %1214 = vmatpush1.msra.mxu0 0.0
  %1215 = vmatprep.subr.mxu0 0.0
  %1216 = vmatpush1.msra.mxu0 0.0
  %1217 = vmatprep.subr.mxu0 0.0
  %1218 = vmatpush1.msra.mxu0 0.0
  %1219 = vmatprep.subr.mxu0 0.0
  %1220 = vmatpush1.msra.mxu0 0.0
  %1221 = vmatprep.subr.mxu0 0.0
  %1222 = vmatpush1.msra.mxu0 0.0
  %1223 = vmatprep.subr.mxu0 0.0
  %1224 = vmatpush1.msra.mxu0 0.0
  %1225 = vmatprep.subr.mxu0 0.0
  %1226 = vmatpush1.msra.mxu0 0.0
  %1227 = vmatprep.subr.mxu0 0.0
  %1228 = vmatpush1.msra.mxu0 0.0
  %1229 = vmatprep.subr.mxu0 0.0
  %1230 = vmatpush1.msra.mxu0 0.0
  %1231 = vmatprep.subr.mxu0 0.0
  %1232 = vmatpush1.msra.mxu0 0.0
  %1233 = vmatprep.subr.mxu0 0.0
  %1234 = vmatpush1.msra.mxu0 0.0
  %1235 = vmatprep.subr.mxu0 0.0
  %1236 = vmatpush1.msra.mxu0 0.0
  %1237 = vmatprep.subr.mxu0 0.0
  %1238 = vmatpush1.msra.mxu0 0.0
  %1239 = vmatprep.mubr.f32.mxu0 0.0
  %1240 = vmatmul.mubr.f32.gmra.mrb[0].mxu0 %v1157
  %v1241 = vpop.f32.mrb[0].mxu0
  %v1242 = vadd.f32 0.0, %v1241
  %v1243 = vpop.f32.mrb[0].mxu0
  %1244 = vmatprep.mubr.f32.mxu0 0.0
  %1245 = vmatmul.mubr.f32.gmra.mrb[0].mxu0 %v1158
  %v1246 = vpop.f32.mrb[0].mxu0
  %v1247 = vadd.f32 0.0, %v1246
  %v1248 = vpop.f32.mrb[0].mxu0
  %1249 = vdwg.mxu0
  %1250 = vst.msk [vmem:[%s6] sm:$0xff] %vm37, %v1242
  %1251 = vst.msk [vmem:[%s6 + $0x8] sm:$0xff] %vm37, %v1247
  // Predicated region
  $region26: #{_forward_impl.1} parent=0 // pred_check
    _
  $region27: #{_forward_impl.1} parent=0 // pred_check_branch
    %1253 = sbr.rel (0) target = $region29
  $region28: #{_forward_impl.1} parent=0 // pred_region
    _
  $region29: #{_forward_impl.1} parent=0 // pred_fallthru
    _
  // Predicated region
  $region30: #{_forward_impl.1} parent=0 // pred_check
    _
  $region31: #{_forward_impl.1} parent=0 // pred_check_branch
    %1255 = sbr.rel (0) target = $region33
  $region32: #{_forward_impl.1} parent=0 // pred_region
    _
  $region33: #{_forward_impl.1} parent=0 // pred_fallthru
    _

</llo_original>
